<compile_context>
chip_gen: v7x
topology: tpu7x:2x2x1
jax: 0.10.0
libtpu: 0.0.40
codegen_flags: <defaults>
</compile_context>

<pallas_src>
import functools
from typing import NamedTuple

import jax
import jax.numpy as jnp
from jax.experimental import pallas as pl
from jax.experimental.pallas import tpu as pltpu


class EmbraceConfig(NamedTuple):
    batch_size: int
    num_frames: int
    image_size: int
    audio_size: int
    embrace_size: int
    num_frames_lstm: int
    n_emotions: int


# ---------------------------------------------------------------------------
# Fused kernel: docking (2x Linear+ReLU) + one-hot embrace + LSTM + dense head.
# Blocked refs are full-array VMEM blocks; w1/w2 arrive as raw (pl.ANY) refs and
# are DMA'd manually so their transfer overlaps compute. F/B/H are static.
# ---------------------------------------------------------------------------
def embrace_fused_kernel(xi_ref, xa_ref, mask_ref,
                         wi_ref, bi_ref, wa_ref, ba_ref,
                         wih_ref, whh_ref, bl_ref,
                         b1_ref, b2_ref,
                         w1_hbm, w2_hbm,
                         o_ref,
                         w1_vmem, w2_vmem, sem,
                         *, num_frames, batch, hidden):
    F, B, H = num_frames, batch, hidden

    # Kick off the head-weight DMAs immediately; they hide behind the docking
    # matmuls (w1) and the whole docking+recurrence (w2).
    w1_cp = pltpu.make_async_copy(w1_hbm, w1_vmem, sem.at[0])
    w2_cp = pltpu.make_async_copy(w2_hbm, w2_vmem, sem.at[1])
    w1_cp.start()
    w2_cp.start()

    # --- EmbraceNet docking + embrace -------------------------------------
    # di/da: [F*B, E]; mask rows are complementary one-hots over modalities,
    # drawn once per embrace feature (the torch reference feeds multinomial a
    # batch of 1 via the .view(1, ...)) and broadcast over every (batch, frame)
    # row — matches the reference module.
    di = jnp.dot(xi_ref[...], wi_ref[...], preferred_element_type=jnp.float32) + bi_ref[...]
    da = jnp.dot(xa_ref[...], wa_ref[...], preferred_element_type=jnp.float32) + ba_ref[...]
    docked = (jnp.maximum(di, 0.0) * mask_ref[0:1, :]
              + jnp.maximum(da, 0.0) * mask_ref[1:2, :])          # [F*B, E], time-major rows

    # --- LSTM (batch_first torch.nn.LSTM, single layer) --------------------
    # Hoisted input projection: one [F*B, E] x [E, 4H] matmul for all timesteps.
    gates_x = (jnp.dot(docked, wih_ref[...], preferred_element_type=jnp.float32)
               + bl_ref[...])                                      # [F*B, 4H]

    whh = whh_ref[...]            # read once; reused by all 8 recurrent matmuls
    w1_cp.wait()                  # w1 resident before the per-step head accumulation

    h = jnp.zeros((B, H), jnp.float32)
    c = jnp.zeros((B, H), jnp.float32)
    acc = jnp.zeros((B, 256), jnp.float32)   # running flat @ w1 accumulation
    # Fully unrolled recurrence (F static): only the tiny [B,H]x[H,4H] matmul and
    # the gate math sit on the serial critical path; the [B,H]x[H,256] head
    # accumulation runs in the MXU shadow of the next step's dependent matmul.
    for t in range(F):
        g = gates_x[t * B:(t + 1) * B, :] + jnp.dot(
            h, whh, preferred_element_type=jnp.float32)            # [B, 4H]
        sig = jax.nn.sigmoid(g)                 # 1 wide EUP push for i/f/o gates
        i_g = sig[:, 0 * H:1 * H]
        f_g = sig[:, 1 * H:2 * H]
        o_g = sig[:, 3 * H:4 * H]
        g_g = jnp.tanh(g[:, 2 * H:3 * H])       # 1 EUP push for the candidate
        c = f_g * c + i_g * g_g
        h = o_g * jnp.tanh(c)
        # flat @ w1 == sum_t h_t @ w1[t*H:(t+1)*H, :]  (static, 8-row aligned slices)
        acc = acc + jnp.dot(h, w1_vmem[t * H:(t + 1) * H, :],
                            preferred_element_type=jnp.float32)

    # --- dense head: Linear -> ReLU -> (Dropout == identity, eval) -> Linear ---
    # TODO(synk): nn.Dropout(0.5) is identity in eval mode; training-mode
    # stochastic dropout is not implemented here.
    hdn = jnp.maximum(acc + b1_ref[...], 0.0)
    w2_cp.wait()
    o_ref[...] = (jnp.dot(hdn, w2_vmem[...], preferred_element_type=jnp.float32)
                  + b2_ref[...]).astype(o_ref.dtype)


def _full_spec(shape):
    nd = len(shape)
    return pl.BlockSpec(tuple(shape), lambda i, _nd=nd: (0,) * _nd)


def init_params(key, cfg: EmbraceConfig):
    Di, Da, E = cfg.image_size, cfg.audio_size, cfg.embrace_size
    H, F, n_emotions = cfg.num_frames_lstm, cfg.num_frames, cfg.n_emotions
    n_pad = ((n_emotions + 127) // 128) * 128      # lane-dense padded head output
    ks = jax.random.split(key, 12)

    def uni(k, shape, fan_in):
        b = 1.0 / (fan_in ** 0.5)
        return jax.random.uniform(k, shape, jnp.float32, minval=-b, maxval=b)

    return dict(
        # docking layers (EmbraceNet), stored as [in, out]
        w_img=uni(ks[0], (Di, E), Di), b_img=uni(ks[1], (1, E), Di),
        w_aud=uni(ks[2], (Da, E), Da), b_aud=uni(ks[3], (1, E), Da),
        # LSTM, gates concatenated along 4H axis in order (i, f, g, o);
        # bias is (b_ih + b_hh) combined as in PyTorch.
        w_ih=uni(ks[4], (E, 4 * H), H),
        w_hh=uni(ks[5], (H, 4 * H), H),
        b_lstm=uni(ks[6], (1, 4 * H), H) + uni(ks[7], (1, 4 * H), H),
        # dense head; w2/b2 zero-padded to a 128-lane slab (real cols: [:n_emotions])
        w1=uni(ks[8], (F * H, 256), F * H), b1=uni(ks[9], (1, 256), F * H),
        w2=jnp.zeros((256, n_pad), jnp.float32).at[:, :n_emotions].set(
            uni(ks[10], (256, n_emotions), 256)),
        b2=jnp.zeros((1, n_pad), jnp.float32).at[:, :n_emotions].set(
            uni(ks[11], (1, n_emotions), 256)),
    )


@functools.partial(jax.jit, static_argnames=("cfg",))
def run_embrace(x, y, params, key, cfg: EmbraceConfig):
    B, F = cfg.batch_size, cfg.num_frames
    E, H = cfg.embrace_size, cfg.num_frames_lstm
    Di, Da = cfg.image_size, cfg.audio_size
    n_emotions = cfg.n_emotions
    n_pad = params["w2"].shape[1]

    # Time-major flattening (row = t*B + b) so the in-kernel recurrence reads
    # contiguous rows per step — fuses into this jit's prologue (no standalone
    # HBM-roundtripping dispatch any more).
    xi = x.astype(jnp.float32).reshape(B, F, Di).transpose(1, 0, 2).reshape(F * B, Di)
    xa = y.astype(jnp.float32).reshape(B, F, Da).transpose(1, 0, 2).reshape(F * B, Da)

    # EmbraceNet selection: availabilities/selection_probabilities default to ones,
    # so the normalized probability is uniform (0.5, 0.5). torch.multinomial is fed
    # a batch of 1 (the stacked leading view dim), so one one-hot mask per embrace
    # feature, broadcast over all batch/frame rows.
    idx = jax.random.categorical(key, jnp.zeros((2,), jnp.float32), shape=(E,))
    mask = jax.nn.one_hot(idx, 2, dtype=jnp.float32).T            # [2, E]

    kernel = functools.partial(embrace_fused_kernel,
                               num_frames=F, batch=B, hidden=H)

    blocked_args = (xi, xa, mask,
                    params["w_img"], params["b_img"], params["w_aud"], params["b_aud"],
                    params["w_ih"], params["w_hh"], params["b_lstm"],
                    params["b1"], params["b2"])
    any_args = (params["w1"], params["w2"])    # manual async DMA inside the kernel

    # Single launch; everything (< ~1 MiB f32) is VMEM-resident for the whole
    # forward pass. NOTE(v7x): at this batch a single grid step is optimal; if the
    # model is scaled up, tile B along a leading "parallel" grid axis to use the
    # second TensorCore and re-derive tiles against 64 MiB per-TC VMEM.
    out_pad = pl.pallas_call(
        kernel,
        out_shape=jax.ShapeDtypeStruct((B, n_pad), jnp.float32),
        grid=(1,),
        in_specs=[_full_spec(a.shape) for a in blocked_args]
                 + [pl.BlockSpec(memory_space=pl.ANY)] * len(any_args),
        out_specs=_full_spec((B, n_pad)),
        scratch_shapes=[pltpu.VMEM((F * H, 256), jnp.float32),
                        pltpu.VMEM((256, n_pad), jnp.float32),
                        pltpu.SemaphoreType.DMA((2,))],
        compiler_params=pltpu.CompilerParams(dimension_semantics=("arbitrary",)),
    )(*blocked_args, *any_args)

    return out_pad[:, :n_emotions]


if __name__ == "__main__":
    # Small, module-consistent config (constructor arguments of Embrace):
    cfg = EmbraceConfig(batch_size=2, num_frames=8, image_size=256, audio_size=128,
                        embrace_size=128, num_frames_lstm=16, n_emotions=8)

    root = jax.random.PRNGKey(0)
    kx, ky, kp, ksel = jax.random.split(root, 4)

    B, F = cfg.batch_size, cfg.num_frames
    x = jax.random.normal(kx, (B, F, cfg.image_size), jnp.float32)
    y = jax.random.normal(ky, (B, F, cfg.audio_size), jnp.float32)
    params = init_params(kp, cfg)

    out = run_embrace(x, y, params, ksel, cfg)
    out = jax.block_until_ready(out)
    assert out.shape == (B, cfg.n_emotions)
    assert out.dtype == jnp.float32
    print("KERNEL_OK")
</pallas_src>

<mosaic_0001>
module attributes {stable_mosaic.version = 11 : i64} {
  func.func @embrace_fused_kernel(%arg0: i32, %arg1: memref<16x256xf32, #tpu.memory_space<vmem>>, %arg2: memref<16x128xf32, #tpu.memory_space<vmem>>, %arg3: memref<2x128xf32, #tpu.memory_space<vmem>>, %arg4: memref<256x128xf32, #tpu.memory_space<vmem>>, %arg5: memref<1x128xf32, #tpu.memory_space<vmem>>, %arg6: memref<128x128xf32, #tpu.memory_space<vmem>>, %arg7: memref<1x128xf32, #tpu.memory_space<vmem>>, %arg8: memref<128x64xf32, #tpu.memory_space<vmem>>, %arg9: memref<16x64xf32, #tpu.memory_space<vmem>>, %arg10: memref<1x64xf32, #tpu.memory_space<vmem>>, %arg11: memref<1x256xf32, #tpu.memory_space<vmem>>, %arg12: memref<1x128xf32, #tpu.memory_space<vmem>>, %arg13: memref<128x256xf32, #tpu.memory_space<any>>, %arg14: memref<256x128xf32, #tpu.memory_space<any>>, %arg15: memref<2x128xf32, #tpu.memory_space<vmem>>, %arg16: memref<128x256xf32, #tpu.memory_space<vmem>>, %arg17: memref<256x128xf32, #tpu.memory_space<vmem>>, %arg18: memref<2x!tpu.dma_semaphore, #tpu.memory_space<semaphore_mem>>) attributes {dimension_semantics = [#tpu.dimension_semantics<arbitrary>], iteration_bounds = array<i64: 1>, scalar_prefetch = 0 : i64, scratch_operands = 3 : i64, tpu.core_type = #tpu.core_type<tc>, window_params = [{pipeline_mode = #tpu.pipeline_mode<synchronous>, transform_indices = @transform_0, window_bounds = array<i64: 16, 256>}, {pipeline_mode = #tpu.pipeline_mode<synchronous>, transform_indices = @transform_1, window_bounds = array<i64: 16, 128>}, {pipeline_mode = #tpu.pipeline_mode<synchronous>, transform_indices = @transform_2, window_bounds = array<i64: 2, 128>}, {pipeline_mode = #tpu.pipeline_mode<synchronous>, transform_indices = @transform_3, window_bounds = array<i64: 256, 128>}, {pipeline_mode = #tpu.pipeline_mode<synchronous>, transform_indices = @transform_4, window_bounds = array<i64: 1, 128>}, {pipeline_mode = #tpu.pipeline_mode<synchronous>, transform_indices = @transform_5, window_bounds = array<i64: 128, 128>}, {pipeline_mode = #tpu.pipeline_mode<synchronous>, transform_indices = @transform_6, window_bounds = array<i64: 1, 128>}, {pipeline_mode = #tpu.pipeline_mode<synchronous>, transform_indices = @transform_7, window_bounds = array<i64: 128, 64>}, {pipeline_mode = #tpu.pipeline_mode<synchronous>, transform_indices = @transform_8, window_bounds = array<i64: 16, 64>}, {pipeline_mode = #tpu.pipeline_mode<synchronous>, transform_indices = @transform_9, window_bounds = array<i64: 1, 64>}, {pipeline_mode = #tpu.pipeline_mode<synchronous>, transform_indices = @transform_10, window_bounds = array<i64: 1, 256>}, {pipeline_mode = #tpu.pipeline_mode<synchronous>, transform_indices = @transform_11, window_bounds = array<i64: 1, 128>}, {}, {}, {pipeline_mode = #tpu.pipeline_mode<synchronous>, transform_indices = @transform_14, window_bounds = array<i64: 2, 128>}]} {
    %c0_i32 = arith.constant 0 : i32
    %0 = tpu.memref_slice %arg18[%c0_i32] : memref<2x!tpu.dma_semaphore, #tpu.memory_space<semaphore_mem>> -> memref<1x!tpu.dma_semaphore, #tpu.memory_space<semaphore_mem>>
    %1 = tpu.memref_squeeze %0 : memref<1x!tpu.dma_semaphore, #tpu.memory_space<semaphore_mem>> -> memref<!tpu.dma_semaphore, #tpu.memory_space<semaphore_mem>>
    tpu.enqueue_dma source(%arg13 : memref<128x256xf32, #tpu.memory_space<any>>) target(%arg16 : memref<128x256xf32, #tpu.memory_space<vmem>>) target_semaphore(%1 : memref<!tpu.dma_semaphore, #tpu.memory_space<semaphore_mem>>)
    %c1_i32 = arith.constant 1 : i32
    %2 = tpu.memref_slice %arg18[%c1_i32] : memref<2x!tpu.dma_semaphore, #tpu.memory_space<semaphore_mem>> -> memref<1x!tpu.dma_semaphore, #tpu.memory_space<semaphore_mem>>
    %3 = tpu.memref_squeeze %2 : memref<1x!tpu.dma_semaphore, #tpu.memory_space<semaphore_mem>> -> memref<!tpu.dma_semaphore, #tpu.memory_space<semaphore_mem>>
    tpu.enqueue_dma source(%arg14 : memref<256x128xf32, #tpu.memory_space<any>>) target(%arg17 : memref<256x128xf32, #tpu.memory_space<vmem>>) target_semaphore(%3 : memref<!tpu.dma_semaphore, #tpu.memory_space<semaphore_mem>>)
    %c0 = arith.constant 0 : index
    %c0_0 = arith.constant 0 : index
    %4 = vector.load %arg1[%c0, %c0_0] : memref<16x256xf32, #tpu.memory_space<vmem>>, vector<16x256xf32>
    %c0_1 = arith.constant 0 : index
    %c0_2 = arith.constant 0 : index
    %5 = vector.load %arg4[%c0_1, %c0_2] : memref<256x128xf32, #tpu.memory_space<vmem>>, vector<256x128xf32>
    %cst = arith.constant dense<0.000000e+00> : vector<16x128xf32>
    %6 = tpu.matmul %4, %5, %cst {dimension_numbers = #tpu.dot_dimension_numbers<[1], [0], [0], [1], [0, 0, 1, 1], [], []>} : vector<16x256xf32>, vector<256x128xf32>, vector<16x128xf32> -> vector<16x128xf32>
    %c0_3 = arith.constant 0 : index
    %c0_4 = arith.constant 0 : index
    %7 = vector.load %arg5[%c0_3, %c0_4] : memref<1x128xf32, #tpu.memory_space<vmem>>, vector<1x128xf32>
    %8 = vector.broadcast %7 : vector<1x128xf32> to vector<16x128xf32>
    %9 = arith.addf %6, %8 : vector<16x128xf32>
    %c0_5 = arith.constant 0 : index
    %c0_6 = arith.constant 0 : index
    %10 = vector.load %arg2[%c0_5, %c0_6] : memref<16x128xf32, #tpu.memory_space<vmem>>, vector<16x128xf32>
    %c0_7 = arith.constant 0 : index
    %c0_8 = arith.constant 0 : index
    %11 = vector.load %arg6[%c0_7, %c0_8] : memref<128x128xf32, #tpu.memory_space<vmem>>, vector<128x128xf32>
    %cst_9 = arith.constant dense<0.000000e+00> : vector<16x128xf32>
    %12 = tpu.matmul %10, %11, %cst_9 {dimension_numbers = #tpu.dot_dimension_numbers<[1], [0], [0], [1], [0, 0, 1, 1], [], []>} : vector<16x128xf32>, vector<128x128xf32>, vector<16x128xf32> -> vector<16x128xf32>
    %c0_10 = arith.constant 0 : index
    %c0_11 = arith.constant 0 : index
    %13 = vector.load %arg7[%c0_10, %c0_11] : memref<1x128xf32, #tpu.memory_space<vmem>>, vector<1x128xf32>
    %14 = vector.broadcast %13 : vector<1x128xf32> to vector<16x128xf32>
    %15 = arith.addf %12, %14 : vector<16x128xf32>
    %cst_12 = arith.constant 0.000000e+00 : f32
    %16 = vector.broadcast %cst_12 : f32 to vector<16x128xf32>
    %17 = arith.maximumf %9, %16 : vector<16x128xf32>
    %c0_13 = arith.constant 0 : index
    %c0_14 = arith.constant 0 : index
    %18 = vector.load %arg3[%c0_13, %c0_14] : memref<2x128xf32, #tpu.memory_space<vmem>>, vector<1x128xf32>
    %19 = vector.broadcast %18 : vector<1x128xf32> to vector<16x128xf32>
    %20 = arith.mulf %17, %19 : vector<16x128xf32>
    %cst_15 = arith.constant 0.000000e+00 : f32
    %21 = vector.broadcast %cst_15 : f32 to vector<16x128xf32>
    %22 = arith.maximumf %15, %21 : vector<16x128xf32>
    %c1 = arith.constant 1 : index
    %c0_16 = arith.constant 0 : index
    %23 = vector.load %arg3[%c1, %c0_16] : memref<2x128xf32, #tpu.memory_space<vmem>>, vector<1x128xf32>
    %24 = vector.broadcast %23 : vector<1x128xf32> to vector<16x128xf32>
    %25 = arith.mulf %22, %24 : vector<16x128xf32>
    %26 = arith.addf %20, %25 : vector<16x128xf32>
    %c0_17 = arith.constant 0 : index
    %c0_18 = arith.constant 0 : index
    %27 = vector.load %arg8[%c0_17, %c0_18] : memref<128x64xf32, #tpu.memory_space<vmem>>, vector<128x64xf32>
    %cst_19 = arith.constant dense<0.000000e+00> : vector<16x64xf32>
    %28 = tpu.matmul %26, %27, %cst_19 {dimension_numbers = #tpu.dot_dimension_numbers<[1], [0], [0], [1], [0, 0, 1, 1], [], []>} : vector<16x128xf32>, vector<128x64xf32>, vector<16x64xf32> -> vector<16x64xf32>
    %c0_20 = arith.constant 0 : index
    %c0_21 = arith.constant 0 : index
    %29 = vector.load %arg10[%c0_20, %c0_21] : memref<1x64xf32, #tpu.memory_space<vmem>>, vector<1x64xf32>
    %30 = vector.broadcast %29 : vector<1x64xf32> to vector<16x64xf32>
    %31 = arith.addf %28, %30 : vector<16x64xf32>
    %c0_22 = arith.constant 0 : index
    %c0_23 = arith.constant 0 : index
    %32 = vector.load %arg9[%c0_22, %c0_23] : memref<16x64xf32, #tpu.memory_space<vmem>>, vector<16x64xf32>
    %c0_i32_24 = arith.constant 0 : i32
    %33 = tpu.memref_slice %arg18[%c0_i32_24] : memref<2x!tpu.dma_semaphore, #tpu.memory_space<semaphore_mem>> -> memref<1x!tpu.dma_semaphore, #tpu.memory_space<semaphore_mem>>
    %34 = tpu.memref_squeeze %33 : memref<1x!tpu.dma_semaphore, #tpu.memory_space<semaphore_mem>> -> memref<!tpu.dma_semaphore, #tpu.memory_space<semaphore_mem>>
    tpu.wait_dma2 semaphore(%34 : memref<!tpu.dma_semaphore, #tpu.memory_space<semaphore_mem>>) src(%arg13 : memref<128x256xf32, #tpu.memory_space<any>>) dst(%arg16 : memref<128x256xf32, #tpu.memory_space<vmem>>)
    %cst_25 = arith.constant 0.000000e+00 : f32
    %35 = vector.broadcast %cst_25 : f32 to vector<2x16xf32>
    %cst_26 = arith.constant 0.000000e+00 : f32
    %36 = vector.broadcast %cst_26 : f32 to vector<2x16xf32>
    %cst_27 = arith.constant 0.000000e+00 : f32
    %37 = vector.broadcast %cst_27 : f32 to vector<2x256xf32>
    %38 = vector.extract_strided_slice %31 {offsets = [0, 0], sizes = [2, 64], strides = [1, 1]} : vector<16x64xf32> to vector<2x64xf32>
    %cst_28 = arith.constant dense<0.000000e+00> : vector<2x64xf32>
    %39 = tpu.matmul %35, %32, %cst_28 {dimension_numbers = #tpu.dot_dimension_numbers<[1], [0], [0], [1], [0, 0, 1, 1], [], []>} : vector<2x16xf32>, vector<16x64xf32>, vector<2x64xf32> -> vector<2x64xf32>
    %40 = arith.addf %38, %39 : vector<2x64xf32>
    %41 = arith.negf %40 : vector<2x64xf32>
    %42 = math.exp %41 : vector<2x64xf32>
    %cst_29 = arith.constant 1.000000e+00 : f32
    %43 = vector.broadcast %cst_29 : f32 to vector<2x64xf32>
    %44 = arith.addf %43, %42 : vector<2x64xf32>
    %45 = arith.divf %43, %44 : vector<2x64xf32>
    %46 = vector.extract_strided_slice %45 {offsets = [0, 0], sizes = [2, 16], strides = [1, 1]} : vector<2x64xf32> to vector<2x16xf32>
    %47 = vector.extract_strided_slice %45 {offsets = [0, 16], sizes = [2, 16], strides = [1, 1]} : vector<2x64xf32> to vector<2x16xf32>
    %48 = vector.extract_strided_slice %45 {offsets = [0, 48], sizes = [2, 16], strides = [1, 1]} : vector<2x64xf32> to vector<2x16xf32>
    %49 = vector.extract_strided_slice %40 {offsets = [0, 32], sizes = [2, 16], strides = [1, 1]} : vector<2x64xf32> to vector<2x16xf32>
    %50 = math.tanh %49 : vector<2x16xf32>
    %51 = arith.mulf %47, %36 : vector<2x16xf32>
    %52 = arith.mulf %46, %50 : vector<2x16xf32>
    %53 = arith.addf %51, %52 : vector<2x16xf32>
    %54 = math.tanh %53 : vector<2x16xf32>
    %55 = arith.mulf %48, %54 : vector<2x16xf32>
    %c0_30 = arith.constant 0 : index
    %c0_31 = arith.constant 0 : index
    %56 = vector.load %arg16[%c0_30, %c0_31] : memref<128x256xf32, #tpu.memory_space<vmem>>, vector<16x256xf32>
    %cst_32 = arith.constant dense<0.000000e+00> : vector<2x256xf32>
    %57 = tpu.matmul %55, %56, %cst_32 {dimension_numbers = #tpu.dot_dimension_numbers<[1], [0], [0], [1], [0, 0, 1, 1], [], []>} : vector<2x16xf32>, vector<16x256xf32>, vector<2x256xf32> -> vector<2x256xf32>
    %58 = arith.addf %37, %57 : vector<2x256xf32>
    %59 = vector.extract_strided_slice %31 {offsets = [2, 0], sizes = [2, 64], strides = [1, 1]} : vector<16x64xf32> to vector<2x64xf32>
    %cst_33 = arith.constant dense<0.000000e+00> : vector<2x64xf32>
    %60 = tpu.matmul %55, %32, %cst_33 {dimension_numbers = #tpu.dot_dimension_numbers<[1], [0], [0], [1], [0, 0, 1, 1], [], []>} : vector<2x16xf32>, vector<16x64xf32>, vector<2x64xf32> -> vector<2x64xf32>
    %61 = arith.addf %59, %60 : vector<2x64xf32>
    %62 = arith.negf %61 : vector<2x64xf32>
    %63 = math.exp %62 : vector<2x64xf32>
    %cst_34 = arith.constant 1.000000e+00 : f32
    %64 = vector.broadcast %cst_34 : f32 to vector<2x64xf32>
    %65 = arith.addf %64, %63 : vector<2x64xf32>
    %66 = arith.divf %64, %65 : vector<2x64xf32>
    %67 = vector.extract_strided_slice %66 {offsets = [0, 0], sizes = [2, 16], strides = [1, 1]} : vector<2x64xf32> to vector<2x16xf32>
    %68 = vector.extract_strided_slice %66 {offsets = [0, 16], sizes = [2, 16], strides = [1, 1]} : vector<2x64xf32> to vector<2x16xf32>
    %69 = vector.extract_strided_slice %66 {offsets = [0, 48], sizes = [2, 16], strides = [1, 1]} : vector<2x64xf32> to vector<2x16xf32>
    %70 = vector.extract_strided_slice %61 {offsets = [0, 32], sizes = [2, 16], strides = [1, 1]} : vector<2x64xf32> to vector<2x16xf32>
    %71 = math.tanh %70 : vector<2x16xf32>
    %72 = arith.mulf %68, %53 : vector<2x16xf32>
    %73 = arith.mulf %67, %71 : vector<2x16xf32>
    %74 = arith.addf %72, %73 : vector<2x16xf32>
    %75 = math.tanh %74 : vector<2x16xf32>
    %76 = arith.mulf %69, %75 : vector<2x16xf32>
    %c16 = arith.constant 16 : index
    %c0_35 = arith.constant 0 : index
    %77 = vector.load %arg16[%c16, %c0_35] : memref<128x256xf32, #tpu.memory_space<vmem>>, vector<16x256xf32>
    %cst_36 = arith.constant dense<0.000000e+00> : vector<2x256xf32>
    %78 = tpu.matmul %76, %77, %cst_36 {dimension_numbers = #tpu.dot_dimension_numbers<[1], [0], [0], [1], [0, 0, 1, 1], [], []>} : vector<2x16xf32>, vector<16x256xf32>, vector<2x256xf32> -> vector<2x256xf32>
    %79 = arith.addf %58, %78 : vector<2x256xf32>
    %80 = vector.extract_strided_slice %31 {offsets = [4, 0], sizes = [2, 64], strides = [1, 1]} : vector<16x64xf32> to vector<2x64xf32>
    %cst_37 = arith.constant dense<0.000000e+00> : vector<2x64xf32>
    %81 = tpu.matmul %76, %32, %cst_37 {dimension_numbers = #tpu.dot_dimension_numbers<[1], [0], [0], [1], [0, 0, 1, 1], [], []>} : vector<2x16xf32>, vector<16x64xf32>, vector<2x64xf32> -> vector<2x64xf32>
    %82 = arith.addf %80, %81 : vector<2x64xf32>
    %83 = arith.negf %82 : vector<2x64xf32>
    %84 = math.exp %83 : vector<2x64xf32>
    %cst_38 = arith.constant 1.000000e+00 : f32
    %85 = vector.broadcast %cst_38 : f32 to vector<2x64xf32>
    %86 = arith.addf %85, %84 : vector<2x64xf32>
    %87 = arith.divf %85, %86 : vector<2x64xf32>
    %88 = vector.extract_strided_slice %87 {offsets = [0, 0], sizes = [2, 16], strides = [1, 1]} : vector<2x64xf32> to vector<2x16xf32>
    %89 = vector.extract_strided_slice %87 {offsets = [0, 16], sizes = [2, 16], strides = [1, 1]} : vector<2x64xf32> to vector<2x16xf32>
    %90 = vector.extract_strided_slice %87 {offsets = [0, 48], sizes = [2, 16], strides = [1, 1]} : vector<2x64xf32> to vector<2x16xf32>
    %91 = vector.extract_strided_slice %82 {offsets = [0, 32], sizes = [2, 16], strides = [1, 1]} : vector<2x64xf32> to vector<2x16xf32>
    %92 = math.tanh %91 : vector<2x16xf32>
    %93 = arith.mulf %89, %74 : vector<2x16xf32>
    %94 = arith.mulf %88, %92 : vector<2x16xf32>
    %95 = arith.addf %93, %94 : vector<2x16xf32>
    %96 = math.tanh %95 : vector<2x16xf32>
    %97 = arith.mulf %90, %96 : vector<2x16xf32>
    %c32 = arith.constant 32 : index
    %c0_39 = arith.constant 0 : index
    %98 = vector.load %arg16[%c32, %c0_39] : memref<128x256xf32, #tpu.memory_space<vmem>>, vector<16x256xf32>
    %cst_40 = arith.constant dense<0.000000e+00> : vector<2x256xf32>
    %99 = tpu.matmul %97, %98, %cst_40 {dimension_numbers = #tpu.dot_dimension_numbers<[1], [0], [0], [1], [0, 0, 1, 1], [], []>} : vector<2x16xf32>, vector<16x256xf32>, vector<2x256xf32> -> vector<2x256xf32>
    %100 = arith.addf %79, %99 : vector<2x256xf32>
    %101 = vector.extract_strided_slice %31 {offsets = [6, 0], sizes = [2, 64], strides = [1, 1]} : vector<16x64xf32> to vector<2x64xf32>
    %cst_41 = arith.constant dense<0.000000e+00> : vector<2x64xf32>
    %102 = tpu.matmul %97, %32, %cst_41 {dimension_numbers = #tpu.dot_dimension_numbers<[1], [0], [0], [1], [0, 0, 1, 1], [], []>} : vector<2x16xf32>, vector<16x64xf32>, vector<2x64xf32> -> vector<2x64xf32>
    %103 = arith.addf %101, %102 : vector<2x64xf32>
    %104 = arith.negf %103 : vector<2x64xf32>
    %105 = math.exp %104 : vector<2x64xf32>
    %cst_42 = arith.constant 1.000000e+00 : f32
    %106 = vector.broadcast %cst_42 : f32 to vector<2x64xf32>
    %107 = arith.addf %106, %105 : vector<2x64xf32>
    %108 = arith.divf %106, %107 : vector<2x64xf32>
    %109 = vector.extract_strided_slice %108 {offsets = [0, 0], sizes = [2, 16], strides = [1, 1]} : vector<2x64xf32> to vector<2x16xf32>
    %110 = vector.extract_strided_slice %108 {offsets = [0, 16], sizes = [2, 16], strides = [1, 1]} : vector<2x64xf32> to vector<2x16xf32>
    %111 = vector.extract_strided_slice %108 {offsets = [0, 48], sizes = [2, 16], strides = [1, 1]} : vector<2x64xf32> to vector<2x16xf32>
    %112 = vector.extract_strided_slice %103 {offsets = [0, 32], sizes = [2, 16], strides = [1, 1]} : vector<2x64xf32> to vector<2x16xf32>
    %113 = math.tanh %112 : vector<2x16xf32>
    %114 = arith.mulf %110, %95 : vector<2x16xf32>
    %115 = arith.mulf %109, %113 : vector<2x16xf32>
    %116 = arith.addf %114, %115 : vector<2x16xf32>
    %117 = math.tanh %116 : vector<2x16xf32>
    %118 = arith.mulf %111, %117 : vector<2x16xf32>
    %c48 = arith.constant 48 : index
    %c0_43 = arith.constant 0 : index
    %119 = vector.load %arg16[%c48, %c0_43] : memref<128x256xf32, #tpu.memory_space<vmem>>, vector<16x256xf32>
    %cst_44 = arith.constant dense<0.000000e+00> : vector<2x256xf32>
    %120 = tpu.matmul %118, %119, %cst_44 {dimension_numbers = #tpu.dot_dimension_numbers<[1], [0], [0], [1], [0, 0, 1, 1], [], []>} : vector<2x16xf32>, vector<16x256xf32>, vector<2x256xf32> -> vector<2x256xf32>
    %121 = arith.addf %100, %120 : vector<2x256xf32>
    %122 = vector.extract_strided_slice %31 {offsets = [8, 0], sizes = [2, 64], strides = [1, 1]} : vector<16x64xf32> to vector<2x64xf32>
    %cst_45 = arith.constant dense<0.000000e+00> : vector<2x64xf32>
    %123 = tpu.matmul %118, %32, %cst_45 {dimension_numbers = #tpu.dot_dimension_numbers<[1], [0], [0], [1], [0, 0, 1, 1], [], []>} : vector<2x16xf32>, vector<16x64xf32>, vector<2x64xf32> -> vector<2x64xf32>
    %124 = arith.addf %122, %123 : vector<2x64xf32>
    %125 = arith.negf %124 : vector<2x64xf32>
    %126 = math.exp %125 : vector<2x64xf32>
    %cst_46 = arith.constant 1.000000e+00 : f32
    %127 = vector.broadcast %cst_46 : f32 to vector<2x64xf32>
    %128 = arith.addf %127, %126 : vector<2x64xf32>
    %129 = arith.divf %127, %128 : vector<2x64xf32>
    %130 = vector.extract_strided_slice %129 {offsets = [0, 0], sizes = [2, 16], strides = [1, 1]} : vector<2x64xf32> to vector<2x16xf32>
    %131 = vector.extract_strided_slice %129 {offsets = [0, 16], sizes = [2, 16], strides = [1, 1]} : vector<2x64xf32> to vector<2x16xf32>
    %132 = vector.extract_strided_slice %129 {offsets = [0, 48], sizes = [2, 16], strides = [1, 1]} : vector<2x64xf32> to vector<2x16xf32>
    %133 = vector.extract_strided_slice %124 {offsets = [0, 32], sizes = [2, 16], strides = [1, 1]} : vector<2x64xf32> to vector<2x16xf32>
    %134 = math.tanh %133 : vector<2x16xf32>
    %135 = arith.mulf %131, %116 : vector<2x16xf32>
    %136 = arith.mulf %130, %134 : vector<2x16xf32>
    %137 = arith.addf %135, %136 : vector<2x16xf32>
    %138 = math.tanh %137 : vector<2x16xf32>
    %139 = arith.mulf %132, %138 : vector<2x16xf32>
    %c64 = arith.constant 64 : index
    %c0_47 = arith.constant 0 : index
    %140 = vector.load %arg16[%c64, %c0_47] : memref<128x256xf32, #tpu.memory_space<vmem>>, vector<16x256xf32>
    %cst_48 = arith.constant dense<0.000000e+00> : vector<2x256xf32>
    %141 = tpu.matmul %139, %140, %cst_48 {dimension_numbers = #tpu.dot_dimension_numbers<[1], [0], [0], [1], [0, 0, 1, 1], [], []>} : vector<2x16xf32>, vector<16x256xf32>, vector<2x256xf32> -> vector<2x256xf32>
    %142 = arith.addf %121, %141 : vector<2x256xf32>
    %143 = vector.extract_strided_slice %31 {offsets = [10, 0], sizes = [2, 64], strides = [1, 1]} : vector<16x64xf32> to vector<2x64xf32>
    %cst_49 = arith.constant dense<0.000000e+00> : vector<2x64xf32>
    %144 = tpu.matmul %139, %32, %cst_49 {dimension_numbers = #tpu.dot_dimension_numbers<[1], [0], [0], [1], [0, 0, 1, 1], [], []>} : vector<2x16xf32>, vector<16x64xf32>, vector<2x64xf32> -> vector<2x64xf32>
    %145 = arith.addf %143, %144 : vector<2x64xf32>
    %146 = arith.negf %145 : vector<2x64xf32>
    %147 = math.exp %146 : vector<2x64xf32>
    %cst_50 = arith.constant 1.000000e+00 : f32
    %148 = vector.broadcast %cst_50 : f32 to vector<2x64xf32>
    %149 = arith.addf %148, %147 : vector<2x64xf32>
    %150 = arith.divf %148, %149 : vector<2x64xf32>
    %151 = vector.extract_strided_slice %150 {offsets = [0, 0], sizes = [2, 16], strides = [1, 1]} : vector<2x64xf32> to vector<2x16xf32>
    %152 = vector.extract_strided_slice %150 {offsets = [0, 16], sizes = [2, 16], strides = [1, 1]} : vector<2x64xf32> to vector<2x16xf32>
    %153 = vector.extract_strided_slice %150 {offsets = [0, 48], sizes = [2, 16], strides = [1, 1]} : vector<2x64xf32> to vector<2x16xf32>
    %154 = vector.extract_strided_slice %145 {offsets = [0, 32], sizes = [2, 16], strides = [1, 1]} : vector<2x64xf32> to vector<2x16xf32>
    %155 = math.tanh %154 : vector<2x16xf32>
    %156 = arith.mulf %152, %137 : vector<2x16xf32>
    %157 = arith.mulf %151, %155 : vector<2x16xf32>
    %158 = arith.addf %156, %157 : vector<2x16xf32>
    %159 = math.tanh %158 : vector<2x16xf32>
    %160 = arith.mulf %153, %159 : vector<2x16xf32>
    %c80 = arith.constant 80 : index
    %c0_51 = arith.constant 0 : index
    %161 = vector.load %arg16[%c80, %c0_51] : memref<128x256xf32, #tpu.memory_space<vmem>>, vector<16x256xf32>
    %cst_52 = arith.constant dense<0.000000e+00> : vector<2x256xf32>
    %162 = tpu.matmul %160, %161, %cst_52 {dimension_numbers = #tpu.dot_dimension_numbers<[1], [0], [0], [1], [0, 0, 1, 1], [], []>} : vector<2x16xf32>, vector<16x256xf32>, vector<2x256xf32> -> vector<2x256xf32>
    %163 = arith.addf %142, %162 : vector<2x256xf32>
    %164 = vector.extract_strided_slice %31 {offsets = [12, 0], sizes = [2, 64], strides = [1, 1]} : vector<16x64xf32> to vector<2x64xf32>
    %cst_53 = arith.constant dense<0.000000e+00> : vector<2x64xf32>
    %165 = tpu.matmul %160, %32, %cst_53 {dimension_numbers = #tpu.dot_dimension_numbers<[1], [0], [0], [1], [0, 0, 1, 1], [], []>} : vector<2x16xf32>, vector<16x64xf32>, vector<2x64xf32> -> vector<2x64xf32>
    %166 = arith.addf %164, %165 : vector<2x64xf32>
    %167 = arith.negf %166 : vector<2x64xf32>
    %168 = math.exp %167 : vector<2x64xf32>
    %cst_54 = arith.constant 1.000000e+00 : f32
    %169 = vector.broadcast %cst_54 : f32 to vector<2x64xf32>
    %170 = arith.addf %169, %168 : vector<2x64xf32>
    %171 = arith.divf %169, %170 : vector<2x64xf32>
    %172 = vector.extract_strided_slice %171 {offsets = [0, 0], sizes = [2, 16], strides = [1, 1]} : vector<2x64xf32> to vector<2x16xf32>
    %173 = vector.extract_strided_slice %171 {offsets = [0, 16], sizes = [2, 16], strides = [1, 1]} : vector<2x64xf32> to vector<2x16xf32>
    %174 = vector.extract_strided_slice %171 {offsets = [0, 48], sizes = [2, 16], strides = [1, 1]} : vector<2x64xf32> to vector<2x16xf32>
    %175 = vector.extract_strided_slice %166 {offsets = [0, 32], sizes = [2, 16], strides = [1, 1]} : vector<2x64xf32> to vector<2x16xf32>
    %176 = math.tanh %175 : vector<2x16xf32>
    %177 = arith.mulf %173, %158 : vector<2x16xf32>
    %178 = arith.mulf %172, %176 : vector<2x16xf32>
    %179 = arith.addf %177, %178 : vector<2x16xf32>
    %180 = math.tanh %179 : vector<2x16xf32>
    %181 = arith.mulf %174, %180 : vector<2x16xf32>
    %c96 = arith.constant 96 : index
    %c0_55 = arith.constant 0 : index
    %182 = vector.load %arg16[%c96, %c0_55] : memref<128x256xf32, #tpu.memory_space<vmem>>, vector<16x256xf32>
    %cst_56 = arith.constant dense<0.000000e+00> : vector<2x256xf32>
    %183 = tpu.matmul %181, %182, %cst_56 {dimension_numbers = #tpu.dot_dimension_numbers<[1], [0], [0], [1], [0, 0, 1, 1], [], []>} : vector<2x16xf32>, vector<16x256xf32>, vector<2x256xf32> -> vector<2x256xf32>
    %184 = arith.addf %163, %183 : vector<2x256xf32>
    %185 = vector.extract_strided_slice %31 {offsets = [14, 0], sizes = [2, 64], strides = [1, 1]} : vector<16x64xf32> to vector<2x64xf32>
    %cst_57 = arith.constant dense<0.000000e+00> : vector<2x64xf32>
    %186 = tpu.matmul %181, %32, %cst_57 {dimension_numbers = #tpu.dot_dimension_numbers<[1], [0], [0], [1], [0, 0, 1, 1], [], []>} : vector<2x16xf32>, vector<16x64xf32>, vector<2x64xf32> -> vector<2x64xf32>
    %187 = arith.addf %185, %186 : vector<2x64xf32>
    %188 = arith.negf %187 : vector<2x64xf32>
    %189 = math.exp %188 : vector<2x64xf32>
    %cst_58 = arith.constant 1.000000e+00 : f32
    %190 = vector.broadcast %cst_58 : f32 to vector<2x64xf32>
    %191 = arith.addf %190, %189 : vector<2x64xf32>
    %192 = arith.divf %190, %191 : vector<2x64xf32>
    %193 = vector.extract_strided_slice %192 {offsets = [0, 0], sizes = [2, 16], strides = [1, 1]} : vector<2x64xf32> to vector<2x16xf32>
    %194 = vector.extract_strided_slice %192 {offsets = [0, 16], sizes = [2, 16], strides = [1, 1]} : vector<2x64xf32> to vector<2x16xf32>
    %195 = vector.extract_strided_slice %192 {offsets = [0, 48], sizes = [2, 16], strides = [1, 1]} : vector<2x64xf32> to vector<2x16xf32>
    %196 = vector.extract_strided_slice %187 {offsets = [0, 32], sizes = [2, 16], strides = [1, 1]} : vector<2x64xf32> to vector<2x16xf32>
    %197 = math.tanh %196 : vector<2x16xf32>
    %198 = arith.mulf %194, %179 : vector<2x16xf32>
    %199 = arith.mulf %193, %197 : vector<2x16xf32>
    %200 = arith.addf %198, %199 : vector<2x16xf32>
    %201 = math.tanh %200 : vector<2x16xf32>
    %202 = arith.mulf %195, %201 : vector<2x16xf32>
    %c112 = arith.constant 112 : index
    %c0_59 = arith.constant 0 : index
    %203 = vector.load %arg16[%c112, %c0_59] : memref<128x256xf32, #tpu.memory_space<vmem>>, vector<16x256xf32>
    %cst_60 = arith.constant dense<0.000000e+00> : vector<2x256xf32>
    %204 = tpu.matmul %202, %203, %cst_60 {dimension_numbers = #tpu.dot_dimension_numbers<[1], [0], [0], [1], [0, 0, 1, 1], [], []>} : vector<2x16xf32>, vector<16x256xf32>, vector<2x256xf32> -> vector<2x256xf32>
    %205 = arith.addf %184, %204 : vector<2x256xf32>
    %c0_61 = arith.constant 0 : index
    %c0_62 = arith.constant 0 : index
    %206 = vector.load %arg11[%c0_61, %c0_62] : memref<1x256xf32, #tpu.memory_space<vmem>>, vector<1x256xf32>
    %207 = vector.broadcast %206 : vector<1x256xf32> to vector<2x256xf32>
    %208 = arith.addf %205, %207 : vector<2x256xf32>
    %cst_63 = arith.constant 0.000000e+00 : f32
    %209 = vector.broadcast %cst_63 : f32 to vector<2x256xf32>
    %210 = arith.maximumf %208, %209 : vector<2x256xf32>
    %c1_i32_64 = arith.constant 1 : i32
    %211 = tpu.memref_slice %arg18[%c1_i32_64] : memref<2x!tpu.dma_semaphore, #tpu.memory_space<semaphore_mem>> -> memref<1x!tpu.dma_semaphore, #tpu.memory_space<semaphore_mem>>
    %212 = tpu.memref_squeeze %211 : memref<1x!tpu.dma_semaphore, #tpu.memory_space<semaphore_mem>> -> memref<!tpu.dma_semaphore, #tpu.memory_space<semaphore_mem>>
    tpu.wait_dma2 semaphore(%212 : memref<!tpu.dma_semaphore, #tpu.memory_space<semaphore_mem>>) src(%arg14 : memref<256x128xf32, #tpu.memory_space<any>>) dst(%arg17 : memref<256x128xf32, #tpu.memory_space<vmem>>)
    %c0_65 = arith.constant 0 : index
    %c0_66 = arith.constant 0 : index
    %213 = vector.load %arg17[%c0_65, %c0_66] : memref<256x128xf32, #tpu.memory_space<vmem>>, vector<256x128xf32>
    %cst_67 = arith.constant dense<0.000000e+00> : vector<2x128xf32>
    %214 = tpu.matmul %210, %213, %cst_67 {dimension_numbers = #tpu.dot_dimension_numbers<[1], [0], [0], [1], [0, 0, 1, 1], [], []>} : vector<2x256xf32>, vector<256x128xf32>, vector<2x128xf32> -> vector<2x128xf32>
    %c0_68 = arith.constant 0 : index
    %c0_69 = arith.constant 0 : index
    %215 = vector.load %arg12[%c0_68, %c0_69] : memref<1x128xf32, #tpu.memory_space<vmem>>, vector<1x128xf32>
    %216 = vector.broadcast %215 : vector<1x128xf32> to vector<2x128xf32>
    %217 = arith.addf %214, %216 : vector<2x128xf32>
    %c0_70 = arith.constant 0 : index
    %c0_71 = arith.constant 0 : index
    %218 = vector.load %arg15[%c0_70, %c0_71] : memref<2x128xf32, #tpu.memory_space<vmem>>, vector<2x128xf32>
    tpu.vector_store %arg15[%c0_70, %c0_71], %217 {strides = array<i32>} : memref<2x128xf32, #tpu.memory_space<vmem>>, vector<2x128xf32>,
    return
  }
  func.func @transform_0(%arg0: i32) -> (i32, i32) {
    %c0_i32 = arith.constant 0 : i32
    %c0_i32_0 = arith.constant 0 : i32
    %c0_i32_1 = arith.constant 0 : i32
    return %c0_i32, %c0_i32_0 : i32, i32
  }
  func.func @transform_1(%arg0: i32) -> (i32, i32) {
    %c0_i32 = arith.constant 0 : i32
    %c0_i32_0 = arith.constant 0 : i32
    %c0_i32_1 = arith.constant 0 : i32
    return %c0_i32, %c0_i32_0 : i32, i32
  }
  func.func @transform_2(%arg0: i32) -> (i32, i32) {
    %c0_i32 = arith.constant 0 : i32
    %c0_i32_0 = arith.constant 0 : i32
    %c0_i32_1 = arith.constant 0 : i32
    return %c0_i32, %c0_i32_0 : i32, i32
  }
  func.func @transform_3(%arg0: i32) -> (i32, i32) {
    %c0_i32 = arith.constant 0 : i32
    %c0_i32_0 = arith.constant 0 : i32
    %c0_i32_1 = arith.constant 0 : i32
    return %c0_i32, %c0_i32_0 : i32, i32
  }
  func.func @transform_4(%arg0: i32) -> (i32, i32) {
    %c0_i32 = arith.constant 0 : i32
    %c0_i32_0 = arith.constant 0 : i32
    %c0_i32_1 = arith.constant 0 : i32
    return %c0_i32, %c0_i32_0 : i32, i32
  }
  func.func @transform_5(%arg0: i32) -> (i32, i32) {
    %c0_i32 = arith.constant 0 : i32
    %c0_i32_0 = arith.constant 0 : i32
    %c0_i32_1 = arith.constant 0 : i32
    return %c0_i32, %c0_i32_0 : i32, i32
  }
  func.func @transform_6(%arg0: i32) -> (i32, i32) {
    %c0_i32 = arith.constant 0 : i32
    %c0_i32_0 = arith.constant 0 : i32
    %c0_i32_1 = arith.constant 0 : i32
    return %c0_i32, %c0_i32_0 : i32, i32
  }
  func.func @transform_7(%arg0: i32) -> (i32, i32) {
    %c0_i32 = arith.constant 0 : i32
    %c0_i32_0 = arith.constant 0 : i32
    %c0_i32_1 = arith.constant 0 : i32
    return %c0_i32, %c0_i32_0 : i32, i32
  }
  func.func @transform_8(%arg0: i32) -> (i32, i32) {
    %c0_i32 = arith.constant 0 : i32
    %c0_i32_0 = arith.constant 0 : i32
    %c0_i32_1 = arith.constant 0 : i32
    return %c0_i32, %c0_i32_0 : i32, i32
  }
  func.func @transform_9(%arg0: i32) -> (i32, i32) {
    %c0_i32 = arith.constant 0 : i32
    %c0_i32_0 = arith.constant 0 : i32
    %c0_i32_1 = arith.constant 0 : i32
    return %c0_i32, %c0_i32_0 : i32, i32
  }
  func.func @transform_10(%arg0: i32) -> (i32, i32) {
    %c0_i32 = arith.constant 0 : i32
    %c0_i32_0 = arith.constant 0 : i32
    %c0_i32_1 = arith.constant 0 : i32
    return %c0_i32, %c0_i32_0 : i32, i32
  }
  func.func @transform_11(%arg0: i32) -> (i32, i32) {
    %c0_i32 = arith.constant 0 : i32
    %c0_i32_0 = arith.constant 0 : i32
    %c0_i32_1 = arith.constant 0 : i32
    return %c0_i32, %c0_i32_0 : i32, i32
  }
  func.func @transform_14(%arg0: i32) -> (i32, i32) {
    %c0_i32 = arith.constant 0 : i32
    %c0_i32_0 = arith.constant 0 : i32
    %c0_i32_1 = arith.constant 0 : i32
    return %c0_i32, %c0_i32_0 : i32, i32
  }
}

</mosaic_0001>

<llo_original>
// kernel: run_embrace.1
$region0: #{run_embrace.1}
  #allocation0 [shape = 'u32[]', space=smem, size = 0x4, offset = 0x4, fixed_abs, tag = 'smem constant byte address 0x4 - core index']
  #allocation1 [shape = 'u32[144,128]{1,0:T(1,128)}', space=vmem, size = 0x12000, scoped, tag = 'internal scratch']
  #allocation2 [shape = 'f32[128,256]{1,0:T(8,128)}', space=vmem, size = 0x20000, scoped, tag = 'scratch operand']
  #allocation3 [shape = 'f32[256,128]{1,0:T(8,128)}', space=vmem, size = 0x20000, scoped, tag = 'scratch operand']
  #allocation4 [shape = 's32[2]{0}', space=sflag, size = 0x8, scoped, tag = 'scratch operand']
  #allocation7 [shape = 's32[]', space=sflag, size = 0x4, offset = 0, fixed_abs, tag = 'sflag constant byte address 0x0 - dummy sync flag']
  #allocation8 [shape = 's32[]', space=sflag, size = 0x4, offset = 0, fixed_abs, tag = 'sflag constant byte address 0x0 - dummy sync flag']
  #allocation9 [shape = 'u32[]', space=smem, size = 0x4, offset = 0x44, fixed_abs, tag = 'smem constant byte address 0x44 - assertion arg 0']
  #allocation10 [shape = 'u32[]', space=smem, size = 0x4, offset = 0x48, fixed_abs, tag = 'smem constant byte address 0x48 - assertion arg 1']
  #allocation11 [shape = 's32[]', space=sflag, size = 0x4, offset = 0, fixed_abs, tag = 'sflag constant byte address 0x0 - dummy sync flag']
  #allocation12 [shape = 's32[]', space=sflag, size = 0x4, offset = 0, fixed_abs, tag = 'sflag constant byte address 0x0 - dummy sync flag']
  %s0 = inlined_call_operand.vmem [shape: f32[16,256], index: 0, kind: input, shape index: {}]
  %s1 = inlined_call_operand.vmem [shape: f32[16,128], index: 1, kind: input, shape index: {}]
  %s2 = inlined_call_operand.vmem [shape: f32[2,128], index: 2, kind: input, shape index: {}]
  %s3 = inlined_call_operand.vmem [shape: f32[256,128], index: 3, kind: input, shape index: {}]
  %s4 = inlined_call_operand.vmem [shape: f32[1,128], index: 4, kind: input, shape index: {}]
  %s5 = inlined_call_operand.vmem [shape: f32[128,128], index: 5, kind: input, shape index: {}]
  %s6 = inlined_call_operand.vmem [shape: f32[1,128], index: 6, kind: input, shape index: {}]
  %s7 = inlined_call_operand.vmem [shape: f32[128,64], index: 7, kind: input, shape index: {}]
  %s8 = inlined_call_operand.vmem [shape: f32[16,64], index: 8, kind: input, shape index: {}]
  %s9 = inlined_call_operand.vmem [shape: f32[1,64], index: 9, kind: input, shape index: {}]
  %s10 = inlined_call_operand.vmem [shape: f32[1,256], index: 10, kind: input, shape index: {}]
  %s11 = inlined_call_operand.vmem [shape: f32[1,128], index: 11, kind: input, shape index: {}]
  %s12 = inlined_call_operand.hbm [shape: f32[128,256], index: 12, kind: input, shape index: {}]
  %s13 = inlined_call_operand.hbm [shape: f32[256,128], index: 13, kind: input, shape index: {}]
  %s14 = inlined_call_operand.hbm [shape: f32[2,128], index: 14, kind: output, shape index: {}]
  %s15 = sld [smem:[#allocation0]]
  $region66: #{run_embrace.1} parent=0
    _
  %s17 = ssub.s32 1, %s15
  %s18 = scalar_select 0, %s17, %s15
  $region1: #{run_embrace.1} parent=0
    #allocation5 [shape = 'u8[1024]{0}', space=vmem, size = 0x400, scoped, tag = 'output window, operand 0, single buffered']
    #allocation6 [shape = 's32[1]{0}', space=sflag, size = 0x4, scoped, tag = 'scoped memory for run_embrace.1']
    %19 = vsyncpa [#allocation6], 0
    // Predicated region
    $region2: #{run_embrace.1} parent=1 // pred_check
      _
    $region3: #{run_embrace.1} parent=1 // pred_check_branch
      %21 = sbr.rel (0) target = $region5
    $region4: #{run_embrace.1} parent=1 // pred_region
      _
    $region5: #{run_embrace.1} parent=1 // pred_fallthru
      _
    // Predicated region
    $region6: #{run_embrace.1} parent=1 // pred_check
      _
    $region7: #{run_embrace.1} parent=1 // pred_check_branch
      %23 = sbr.rel (0) target = $region9
    $region8: #{run_embrace.1} parent=1 // pred_region
      _
    $region9: #{run_embrace.1} parent=1 // pred_fallthru
      _
    // Predicated region
    $region10: #{run_embrace.1} parent=1 // pred_check
      _
    $region11: #{run_embrace.1} parent=1 // pred_check_branch
      %25 = sbr.rel (0) target = $region13
    $region12: #{run_embrace.1} parent=1 // pred_region
      _
    $region13: #{run_embrace.1} parent=1 // pred_fallthru
      _
    // Predicated region
    $region14: #{run_embrace.1} parent=1 // pred_check
      _
    $region15: #{run_embrace.1} parent=1 // pred_check_branch
      %27 = sbr.rel (0) target = $region17
    $region16: #{run_embrace.1} parent=1 // pred_region
      _
    $region17: #{run_embrace.1} parent=1 // pred_fallthru
      _
    // Predicated region
    $region18: #{run_embrace.1} parent=1 // pred_check
      _
    $region19: #{run_embrace.1} parent=1 // pred_check_branch
      %29 = sbr.rel (0) target = $region21
    $region20: #{run_embrace.1} parent=1 // pred_region
      _
    $region21: #{run_embrace.1} parent=1 // pred_fallthru
      _
    // Predicated region
    $region22: #{run_embrace.1} parent=1 // pred_check
      _
    $region23: #{run_embrace.1} parent=1 // pred_check_branch
      %31 = sbr.rel (0) target = $region25
    $region24: #{run_embrace.1} parent=1 // pred_region
      _
    $region25: #{run_embrace.1} parent=1 // pred_fallthru
      _
    // Predicated region
    $region26: #{run_embrace.1} parent=1 // pred_check
      _
    $region27: #{run_embrace.1} parent=1 // pred_check_branch
      %33 = sbr.rel (0) target = $region29
    $region28: #{run_embrace.1} parent=1 // pred_region
      _
    $region29: #{run_embrace.1} parent=1 // pred_fallthru
      _
    // Predicated region
    $region30: #{run_embrace.1} parent=1 // pred_check
      _
    $region31: #{run_embrace.1} parent=1 // pred_check_branch
      %35 = sbr.rel (0) target = $region33
    $region32: #{run_embrace.1} parent=1 // pred_region
      _
    $region33: #{run_embrace.1} parent=1 // pred_fallthru
      _
    // Predicated region
    $region34: #{run_embrace.1} parent=1 // pred_check
      _
    $region35: #{run_embrace.1} parent=1 // pred_check_branch
      %37 = sbr.rel (0) target = $region37
    $region36: #{run_embrace.1} parent=1 // pred_region
      _
    $region37: #{run_embrace.1} parent=1 // pred_fallthru
      _
    // Predicated region
    $region38: #{run_embrace.1} parent=1 // pred_check
      _
    $region39: #{run_embrace.1} parent=1 // pred_check_branch
      %39 = sbr.rel (0) target = $region41
    $region40: #{run_embrace.1} parent=1 // pred_region
      _
    $region41: #{run_embrace.1} parent=1 // pred_fallthru
      _
    // Predicated region
    $region42: #{run_embrace.1} parent=1 // pred_check
      _
    $region43: #{run_embrace.1} parent=1 // pred_check_branch
      %41 = sbr.rel (0) target = $region45
    $region44: #{run_embrace.1} parent=1 // pred_region
      _
    $region45: #{run_embrace.1} parent=1 // pred_fallthru
      _
    // Predicated region
    $region46: #{run_embrace.1} parent=1 // pred_check
      _
    $region47: #{run_embrace.1} parent=1 // pred_check_branch
      %43 = sbr.rel (0) target = $region49
    $region48: #{run_embrace.1} parent=1 // pred_region
      _
    $region49: #{run_embrace.1} parent=1 // pred_fallthru
      _
    // Predicated region
    $region50: #{run_embrace.1} parent=1 // pred_check
      _
    $region51: #{run_embrace.1} parent=1 // pred_check_branch
      %45 = sbr.rel target = $region53
    $region52: #{run_embrace.1} parent=1 // pred_region
      %46 = sst [smem:[#allocation9]] [#allocation8]
      %47 = sst [smem:[#allocation10]] [#allocation7]
    $region53: #{run_embrace.1} parent=1 // pred_fallthru
      _
    %49 = shalt.err (0)
    %s51 = sshll.u32 [#allocation2], 4
    %s52 = int_to_ptr.vmem [resolvable:$true] %s51
    %54 = dma.hbm_to_vmem [thread:$0]  %s12, 4096, %s52, [#allocation4]
    %s55 = scalar_lea.sflag [#allocation4], 1
    // Predicated region
    $region54: #{run_embrace.1} parent=1 // pred_check
      _
    $region55: #{run_embrace.1} parent=1 // pred_check_branch
      %57 = sbr.rel target = $region57
    $region56: #{run_embrace.1} parent=1 // pred_region
      %58 = sst [smem:[#allocation9]] [#allocation12]
      %59 = sst [smem:[#allocation10]] [#allocation11]
    $region57: #{run_embrace.1} parent=1 // pred_fallthru
      _
    %61 = shalt.err (0)
    %s63 = sshll.u32 [#allocation3], 4
    %s64 = int_to_ptr.vmem [resolvable:$true] %s63
    %66 = dma.hbm_to_vmem [thread:$0]  %s13, 4096, %s64, %s55
    %v67 = vld [vmem:[%s0] sm:$0xff]
    %v68 = vld [vmem:[%s0 + $0x8] sm:$0xff]
    %v69 = vld [vmem:[%s0 + $0x10] sm:$0xff]
    %v70 = vld [vmem:[%s0 + $0x18] sm:$0xff]
    %v71 = vld [vmem:[%s3] sm:$0xff]
    %v72 = vld [vmem:[%s3 + $0x8] sm:$0xff]
    %v73 = vld [vmem:[%s3 + $0x10] sm:$0xff]
    %v74 = vld [vmem:[%s3 + $0x18] sm:$0xff]
    %v75 = vld [vmem:[%s3 + $0x20] sm:$0xff]
    %v76 = vld [vmem:[%s3 + $0x28] sm:$0xff]
    %v77 = vld [vmem:[%s3 + $0x30] sm:$0xff]
    %v78 = vld [vmem:[%s3 + $0x38] sm:$0xff]
    %v79 = vld [vmem:[%s3 + $0x40] sm:$0xff]
    %v80 = vld [vmem:[%s3 + $0x48] sm:$0xff]
    %v81 = vld [vmem:[%s3 + $0x50] sm:$0xff]
    %v82 = vld [vmem:[%s3 + $0x58] sm:$0xff]
    %v83 = vld [vmem:[%s3 + $0x60] sm:$0xff]
    %v84 = vld [vmem:[%s3 + $0x68] sm:$0xff]
    %v85 = vld [vmem:[%s3 + $0x70] sm:$0xff]
    %v86 = vld [vmem:[%s3 + $0x78] sm:$0xff]
    %v87 = vld [vmem:[%s3 + $0x80] sm:$0xff]
    %v88 = vld [vmem:[%s3 + $0x88] sm:$0xff]
    %v89 = vld [vmem:[%s3 + $0x90] sm:$0xff]
    %v90 = vld [vmem:[%s3 + $0x98] sm:$0xff]
    %v91 = vld [vmem:[%s3 + $0xa0] sm:$0xff]
    %v92 = vld [vmem:[%s3 + $0xa8] sm:$0xff]
    %v93 = vld [vmem:[%s3 + $0xb0] sm:$0xff]
    %v94 = vld [vmem:[%s3 + $0xb8] sm:$0xff]
    %v95 = vld [vmem:[%s3 + $0xc0] sm:$0xff]
    %v96 = vld [vmem:[%s3 + $0xc8] sm:$0xff]
    %v97 = vld [vmem:[%s3 + $0xd0] sm:$0xff]
    %v98 = vld [vmem:[%s3 + $0xd8] sm:$0xff]
    %v99 = vld [vmem:[%s3 + $0xe0] sm:$0xff]
    %v100 = vld [vmem:[%s3 + $0xe8] sm:$0xff]
    %v101 = vld [vmem:[%s3 + $0xf0] sm:$0xff]
    %v102 = vld [vmem:[%s3 + $0xf8] sm:$0xff]
    %v103 = vld [vmem:[%s4] sm:$0x1]
    %v105 = vlaneseq
    %v106 = vshrl.u32 %v105, 7
    %v107 = vsub.s32 0, %v106
    %v108 = vrot.slane %v103, %v107
    %110 = vmatprep.subr.mxu0 0.0
    %111 = vmatpush1.msra.mxu0 %v71
    %112 = vmatprep.subr.mxu0 0.0
    %113 = vmatpush1.msra.mxu0 %v72
    %114 = vmatprep.subr.mxu0 0.0
    %115 = vmatpush1.msra.mxu0 %v73
    %116 = vmatprep.subr.mxu0 0.0
    %117 = vmatpush1.msra.mxu0 %v74
    %118 = vmatprep.subr.mxu0 0.0
    %119 = vmatpush1.msra.mxu0 %v75
    %120 = vmatprep.subr.mxu0 0.0
    %121 = vmatpush1.msra.mxu0 %v76
    %122 = vmatprep.subr.mxu0 0.0
    %123 = vmatpush1.msra.mxu0 %v77
    %124 = vmatprep.subr.mxu0 0.0
    %125 = vmatpush1.msra.mxu0 %v78
    %126 = vmatprep.subr.mxu0 0.0
    %127 = vmatpush1.msra.mxu0 %v79
    %128 = vmatprep.subr.mxu0 0.0
    %129 = vmatpush1.msra.mxu0 %v80
    %130 = vmatprep.subr.mxu0 0.0
    %131 = vmatpush1.msra.mxu0 %v81
    %132 = vmatprep.subr.mxu0 0.0
    %133 = vmatpush1.msra.mxu0 %v82
    %134 = vmatprep.subr.mxu0 0.0
    %135 = vmatpush1.msra.mxu0 %v83
    %136 = vmatprep.subr.mxu0 0.0
    %137 = vmatpush1.msra.mxu0 %v84
    %138 = vmatprep.subr.mxu0 0.0
    %139 = vmatpush1.msra.mxu0 %v85
    %140 = vmatprep.subr.mxu0 0.0
    %141 = vmatpush1.msra.mxu0 %v86
    %142 = vmatprep.subr.mxu0 0.0
    %143 = vmatpush1.msra.mxu0 %v87
    %144 = vmatprep.subr.mxu0 0.0
    %145 = vmatpush1.msra.mxu0 %v88
    %146 = vmatprep.subr.mxu0 0.0
    %147 = vmatpush1.msra.mxu0 %v89
    %148 = vmatprep.subr.mxu0 0.0
    %149 = vmatpush1.msra.mxu0 %v90
    %150 = vmatprep.subr.mxu0 0.0
    %151 = vmatpush1.msra.mxu0 %v91
    %152 = vmatprep.subr.mxu0 0.0
    %153 = vmatpush1.msra.mxu0 %v92
    %154 = vmatprep.subr.mxu0 0.0
    %155 = vmatpush1.msra.mxu0 %v93
    %156 = vmatprep.subr.mxu0 0.0
    %157 = vmatpush1.msra.mxu0 %v94
    %158 = vmatprep.subr.mxu0 0.0
    %159 = vmatpush1.msra.mxu0 %v95
    %160 = vmatprep.subr.mxu0 0.0
    %161 = vmatpush1.msra.mxu0 %v96
    %162 = vmatprep.subr.mxu0 0.0
    %163 = vmatpush1.msra.mxu0 %v97
    %164 = vmatprep.subr.mxu0 0.0
    %165 = vmatpush1.msra.mxu0 %v98
    %166 = vmatprep.subr.mxu0 0.0
    %167 = vmatpush1.msra.mxu0 %v99
    %168 = vmatprep.subr.mxu0 0.0
    %169 = vmatpush1.msra.mxu0 %v100
    %170 = vmatprep.subr.mxu0 0.0
    %171 = vmatpush1.msra.mxu0 %v101
    %172 = vmatprep.subr.mxu0 0.0
    %173 = vmatpush1.msra.mxu0 %v102
    %174 = vmatprep.mubr.f32.mxu0 %v68
    %175 = vmatmul.mubr.f32.gmra.mrb[0].mxu0 %v67
    %v176 = vpop.f32.mrb[0].mxu0
    %v177 = vadd.f32 %v108, %v176
    %v178 = vpop.f32.mrb[0].mxu0
    %179 = vmatprep.mubr.f32.mxu0 %v70
    %180 = vmatmul.mubr.f32.gmra.mrb[0].mxu0 %v69
    %v181 = vpop.f32.mrb[0].mxu0
    %v182 = vadd.f32 %v108, %v181
    %v183 = vpop.f32.mrb[0].mxu0
    %184 = vdwg.mxu0
    %v185 = vld [vmem:[%s1] sm:$0xff]
    %v186 = vld [vmem:[%s1 + $0x8] sm:$0xff]
    %v187 = vld [vmem:[%s5] sm:$0xff]
    %v188 = vld [vmem:[%s5 + $0x8] sm:$0xff]
    %v189 = vld [vmem:[%s5 + $0x10] sm:$0xff]
    %v190 = vld [vmem:[%s5 + $0x18] sm:$0xff]
    %v191 = vld [vmem:[%s5 + $0x20] sm:$0xff]
    %v192 = vld [vmem:[%s5 + $0x28] sm:$0xff]
    %v193 = vld [vmem:[%s5 + $0x30] sm:$0xff]
    %v194 = vld [vmem:[%s5 + $0x38] sm:$0xff]
    %v195 = vld [vmem:[%s5 + $0x40] sm:$0xff]
    %v196 = vld [vmem:[%s5 + $0x48] sm:$0xff]
    %v197 = vld [vmem:[%s5 + $0x50] sm:$0xff]
    %v198 = vld [vmem:[%s5 + $0x58] sm:$0xff]
    %v199 = vld [vmem:[%s5 + $0x60] sm:$0xff]
    %v200 = vld [vmem:[%s5 + $0x68] sm:$0xff]
    %v201 = vld [vmem:[%s5 + $0x70] sm:$0xff]
    %v202 = vld [vmem:[%s5 + $0x78] sm:$0xff]
    %v203 = vld [vmem:[%s6] sm:$0x1]
    %v205 = vlaneseq
    %v206 = vshrl.u32 %v205, 7
    %v207 = vsub.s32 0, %v206
    %v208 = vrot.slane %v203, %v207
    %210 = vmatprep.subr.mxu0 0.0
    %211 = vmatpush1.msra.mxu0 %v187
    %212 = vmatprep.subr.mxu0 0.0
    %213 = vmatpush1.msra.mxu0 %v188
    %214 = vmatprep.subr.mxu0 0.0
    %215 = vmatpush1.msra.mxu0 %v189
    %216 = vmatprep.subr.mxu0 0.0
    %217 = vmatpush1.msra.mxu0 %v190
    %218 = vmatprep.subr.mxu0 0.0
    %219 = vmatpush1.msra.mxu0 %v191
    %220 = vmatprep.subr.mxu0 0.0
    %221 = vmatpush1.msra.mxu0 %v192
    %222 = vmatprep.subr.mxu0 0.0
    %223 = vmatpush1.msra.mxu0 %v193
    %224 = vmatprep.subr.mxu0 0.0
    %225 = vmatpush1.msra.mxu0 %v194
    %226 = vmatprep.subr.mxu0 0.0
    %227 = vmatpush1.msra.mxu0 %v195
    %228 = vmatprep.subr.mxu0 0.0
    %229 = vmatpush1.msra.mxu0 %v196
    %230 = vmatprep.subr.mxu0 0.0
    %231 = vmatpush1.msra.mxu0 %v197
    %232 = vmatprep.subr.mxu0 0.0
    %233 = vmatpush1.msra.mxu0 %v198
    %234 = vmatprep.subr.mxu0 0.0
    %235 = vmatpush1.msra.mxu0 %v199
    %236 = vmatprep.subr.mxu0 0.0
    %237 = vmatpush1.msra.mxu0 %v200
    %238 = vmatprep.subr.mxu0 0.0
    %239 = vmatpush1.msra.mxu0 %v201
    %240 = vmatprep.subr.mxu0 0.0
    %241 = vmatpush1.msra.mxu0 %v202
    %242 = vmatprep.subr.mxu0 0.0
    %243 = vmatpush1.msra.mxu0 0.0
    %244 = vmatprep.subr.mxu0 0.0
    %245 = vmatpush1.msra.mxu0 0.0
    %246 = vmatprep.subr.mxu0 0.0
    %247 = vmatpush1.msra.mxu0 0.0
    %248 = vmatprep.subr.mxu0 0.0
    %249 = vmatpush1.msra.mxu0 0.0
    %250 = vmatprep.subr.mxu0 0.0
    %251 = vmatpush1.msra.mxu0 0.0
    %252 = vmatprep.subr.mxu0 0.0
    %253 = vmatpush1.msra.mxu0 0.0
    %254 = vmatprep.subr.mxu0 0.0
    %255 = vmatpush1.msra.mxu0 0.0
    %256 = vmatprep.subr.mxu0 0.0
    %257 = vmatpush1.msra.mxu0 0.0
    %258 = vmatprep.subr.mxu0 0.0
    %259 = vmatpush1.msra.mxu0 0.0
    %260 = vmatprep.subr.mxu0 0.0
    %261 = vmatpush1.msra.mxu0 0.0
    %262 = vmatprep.subr.mxu0 0.0
    %263 = vmatpush1.msra.mxu0 0.0
    %264 = vmatprep.subr.mxu0 0.0
    %265 = vmatpush1.msra.mxu0 0.0
    %266 = vmatprep.subr.mxu0 0.0
    %267 = vmatpush1.msra.mxu0 0.0
    %268 = vmatprep.subr.mxu0 0.0
    %269 = vmatpush1.msra.mxu0 0.0
    %270 = vmatprep.subr.mxu0 0.0
    %271 = vmatpush1.msra.mxu0 0.0
    %272 = vmatprep.subr.mxu0 0.0
    %273 = vmatpush1.msra.mxu0 0.0
    %274 = vmatprep.mubr.f32.mxu0 0.0
    %275 = vmatmul.mubr.f32.gmra.mrb[0].mxu0 %v185
    %v276 = vpop.f32.mrb[0].mxu0
    %v277 = vadd.f32 %v208, %v276
    %v278 = vpop.f32.mrb[0].mxu0
    %279 = vmatprep.mubr.f32.mxu0 0.0
    %280 = vmatmul.mubr.f32.gmra.mrb[0].mxu0 %v186
    %v281 = vpop.f32.mrb[0].mxu0
    %v282 = vadd.f32 %v208, %v281
    %v283 = vpop.f32.mrb[0].mxu0
    %284 = vdwg.mxu0
    %v285 = vmax.f32 %v177, 0.0
    %v286 = vmax.f32 %v182, 0.0
    %v287 = vld [vmem:[%s2] sm:$0x1]
    %v288 = vlaneseq
    %v289 = vshrl.u32 %v288, 7
    %v290 = vsub.s32 0, %v289
    %v291 = vrot.slane %v287, %v290
    %v292 = vmul.f32 %v285, %v291
    %v293 = vmul.f32 %v286, %v291
    %v294 = vmax.f32 %v277, 0.0
    %v295 = vmax.f32 %v282, 0.0
    %v296 = vld [vmem:[%s2 + $0x1] sm:$0x1]
    %v297 = vlaneseq
    %v298 = vshrl.u32 %v297, 7
    %v299 = vsub.s32 0, %v298
    %v300 = vrot.slane %v296, %v299
    %v301 = vmul.f32 %v294, %v300
    %v302 = vmul.f32 %v295, %v300
    %v303 = vadd.f32 %v292, %v301
    %v304 = vadd.f32 %v293, %v302
    %v305 = vld [vmem:[%s7] sm:$0xff]
    %v306 = vld [vmem:[%s7 + $0x8] sm:$0xff]
    %v307 = vld [vmem:[%s7 + $0x10] sm:$0xff]
    %v308 = vld [vmem:[%s7 + $0x18] sm:$0xff]
    %v309 = vld [vmem:[%s7 + $0x20] sm:$0xff]
    %v310 = vld [vmem:[%s7 + $0x28] sm:$0xff]
    %v311 = vld [vmem:[%s7 + $0x30] sm:$0xff]
    %v312 = vld [vmem:[%s7 + $0x38] sm:$0xff]
    %v313 = vld [vmem:[%s7 + $0x40] sm:$0xff]
    %v314 = vld [vmem:[%s7 + $0x48] sm:$0xff]
    %v315 = vld [vmem:[%s7 + $0x50] sm:$0xff]
    %v316 = vld [vmem:[%s7 + $0x58] sm:$0xff]
    %v317 = vld [vmem:[%s7 + $0x60] sm:$0xff]
    %v318 = vld [vmem:[%s7 + $0x68] sm:$0xff]
    %v319 = vld [vmem:[%s7 + $0x70] sm:$0xff]
    %v320 = vld [vmem:[%s7 + $0x78] sm:$0xff]
    %v321 = vld [vmem:[%s9] sm:$0x1]
    %v323 = vlaneseq
    %v324 = vshrl.u32 %v323, 7
    %v325 = vsub.s32 0, %v324
    %v326 = vrot.slane %v321, %v325
    %328 = vmatprep.subr.mxu0 0.0
    %329 = vmatpush1.msra.mxu0 %v305
    %330 = vmatprep.subr.mxu0 0.0
    %331 = vmatpush1.msra.mxu0 %v306
    %332 = vmatprep.subr.mxu0 0.0
    %333 = vmatpush1.msra.mxu0 %v307
    %334 = vmatprep.subr.mxu0 0.0
    %335 = vmatpush1.msra.mxu0 %v308
    %336 = vmatprep.subr.mxu0 0.0
    %337 = vmatpush1.msra.mxu0 %v309
    %338 = vmatprep.subr.mxu0 0.0
    %339 = vmatpush1.msra.mxu0 %v310
    %340 = vmatprep.subr.mxu0 0.0
    %341 = vmatpush1.msra.mxu0 %v311
    %342 = vmatprep.subr.mxu0 0.0
    %343 = vmatpush1.msra.mxu0 %v312
    %344 = vmatprep.subr.mxu0 0.0
    %345 = vmatpush1.msra.mxu0 %v313
    %346 = vmatprep.subr.mxu0 0.0
    %347 = vmatpush1.msra.mxu0 %v314
    %348 = vmatprep.subr.mxu0 0.0
    %349 = vmatpush1.msra.mxu0 %v315
    %350 = vmatprep.subr.mxu0 0.0
    %351 = vmatpush1.msra.mxu0 %v316
    %352 = vmatprep.subr.mxu0 0.0
    %353 = vmatpush1.msra.mxu0 %v317
    %354 = vmatprep.subr.mxu0 0.0
    %355 = vmatpush1.msra.mxu0 %v318
    %356 = vmatprep.subr.mxu0 0.0
    %357 = vmatpush1.msra.mxu0 %v319
    %358 = vmatprep.subr.mxu0 0.0
    %359 = vmatpush1.msra.mxu0 %v320
    %360 = vmatprep.subr.mxu0 0.0
    %361 = vmatpush1.msra.mxu0 0.0
    %362 = vmatprep.subr.mxu0 0.0
    %363 = vmatpush1.msra.mxu0 0.0
    %364 = vmatprep.subr.mxu0 0.0
    %365 = vmatpush1.msra.mxu0 0.0
    %366 = vmatprep.subr.mxu0 0.0
    %367 = vmatpush1.msra.mxu0 0.0
    %368 = vmatprep.subr.mxu0 0.0
    %369 = vmatpush1.msra.mxu0 0.0
    %370 = vmatprep.subr.mxu0 0.0
    %371 = vmatpush1.msra.mxu0 0.0
    %372 = vmatprep.subr.mxu0 0.0
    %373 = vmatpush1.msra.mxu0 0.0
    %374 = vmatprep.subr.mxu0 0.0
    %375 = vmatpush1.msra.mxu0 0.0
    %376 = vmatprep.subr.mxu0 0.0
    %377 = vmatpush1.msra.mxu0 0.0
    %378 = vmatprep.subr.mxu0 0.0
    %379 = vmatpush1.msra.mxu0 0.0
    %380 = vmatprep.subr.mxu0 0.0
    %381 = vmatpush1.msra.mxu0 0.0
    %382 = vmatprep.subr.mxu0 0.0
    %383 = vmatpush1.msra.mxu0 0.0
    %384 = vmatprep.subr.mxu0 0.0
    %385 = vmatpush1.msra.mxu0 0.0
    %386 = vmatprep.subr.mxu0 0.0
    %387 = vmatpush1.msra.mxu0 0.0
    %388 = vmatprep.subr.mxu0 0.0
    %389 = vmatpush1.msra.mxu0 0.0
    %390 = vmatprep.subr.mxu0 0.0
    %391 = vmatpush1.msra.mxu0 0.0
    %392 = vmatprep.mubr.f32.mxu0 0.0
    %393 = vmatmul.mubr.f32.gmra.mrb[0].mxu0 %v303
    %v394 = vpop.f32.mrb[0].mxu0
    %v395 = vadd.f32 %v326, %v394
    %v396 = vpop.f32.mrb[0].mxu0
    %397 = vmatprep.mubr.f32.mxu0 0.0
    %398 = vmatmul.mubr.f32.gmra.mrb[0].mxu0 %v304
    %v399 = vpop.f32.mrb[0].mxu0
    %v400 = vadd.f32 %v326, %v399
    %v401 = vpop.f32.mrb[0].mxu0
    %402 = vdwg.mxu0
    %v403 = vld [vmem:[%s8] sm:$0xff]
    %v404 = vld [vmem:[%s8 + $0x8] sm:$0xff]
    %s405 = smul.u32 8, 16
    %s406 = smul.u32 %s405, 2
    %s407 = sshll.u32 %s406, 4
    %408 = dma.done [#allocation4], %s407
    %vm409 = vcmask 130048
    %v411 = vsel %vm409, 0.0, 0
    %413 = vmatprep.subr.mxu0 0.0
    %414 = vmatpush1.msra.mxu0 %v403
    %415 = vmatprep.subr.mxu0 0.0
    %416 = vmatpush1.msra.mxu0 %v404
    %417 = vmatprep.subr.mxu0 0.0
    %418 = vmatpush1.msra.mxu0 0.0
    %419 = vmatprep.subr.mxu0 0.0
    %420 = vmatpush1.msra.mxu0 0.0
    %421 = vmatprep.subr.mxu0 0.0
    %422 = vmatpush1.msra.mxu0 0.0
    %423 = vmatprep.subr.mxu0 0.0
    %424 = vmatpush1.msra.mxu0 0.0
    %425 = vmatprep.subr.mxu0 0.0
    %426 = vmatpush1.msra.mxu0 0.0
    %427 = vmatprep.subr.mxu0 0.0
    %428 = vmatpush1.msra.mxu0 0.0
    %429 = vmatprep.subr.mxu0 0.0
    %430 = vmatpush1.msra.mxu0 0.0
    %431 = vmatprep.subr.mxu0 0.0
    %432 = vmatpush1.msra.mxu0 0.0
    %433 = vmatprep.subr.mxu0 0.0
    %434 = vmatpush1.msra.mxu0 0.0
    %435 = vmatprep.subr.mxu0 0.0
    %436 = vmatpush1.msra.mxu0 0.0
    %437 = vmatprep.subr.mxu0 0.0
    %438 = vmatpush1.msra.mxu0 0.0
    %439 = vmatprep.subr.mxu0 0.0
    %440 = vmatpush1.msra.mxu0 0.0
    %441 = vmatprep.subr.mxu0 0.0
    %442 = vmatpush1.msra.mxu0 0.0
    %443 = vmatprep.subr.mxu0 0.0
    %444 = vmatpush1.msra.mxu0 0.0
    %445 = vmatprep.subr.mxu0 0.0
    %446 = vmatpush1.msra.mxu0 0.0
    %447 = vmatprep.subr.mxu0 0.0
    %448 = vmatpush1.msra.mxu0 0.0
    %449 = vmatprep.subr.mxu0 0.0
    %450 = vmatpush1.msra.mxu0 0.0
    %451 = vmatprep.subr.mxu0 0.0
    %452 = vmatpush1.msra.mxu0 0.0
    %453 = vmatprep.subr.mxu0 0.0
    %454 = vmatpush1.msra.mxu0 0.0
    %455 = vmatprep.subr.mxu0 0.0
    %456 = vmatpush1.msra.mxu0 0.0
    %457 = vmatprep.subr.mxu0 0.0
    %458 = vmatpush1.msra.mxu0 0.0
    %459 = vmatprep.subr.mxu0 0.0
    %460 = vmatpush1.msra.mxu0 0.0
    %461 = vmatprep.subr.mxu0 0.0
    %462 = vmatpush1.msra.mxu0 0.0
    %463 = vmatprep.subr.mxu0 0.0
    %464 = vmatpush1.msra.mxu0 0.0
    %465 = vmatprep.subr.mxu0 0.0
    %466 = vmatpush1.msra.mxu0 0.0
    %467 = vmatprep.subr.mxu0 0.0
    %468 = vmatpush1.msra.mxu0 0.0
    %469 = vmatprep.subr.mxu0 0.0
    %470 = vmatpush1.msra.mxu0 0.0
    %471 = vmatprep.subr.mxu0 0.0
    %472 = vmatpush1.msra.mxu0 0.0
    %473 = vmatprep.subr.mxu0 0.0
    %474 = vmatpush1.msra.mxu0 0.0
    %475 = vmatprep.subr.mxu0 0.0
    %476 = vmatpush1.msra.mxu0 0.0
    %477 = vmatprep.mubr.f32.mxu0 0.0
    %478 = vmatmul.mubr.f32.gmra.mrb[0].mxu0 %v411
    %v479 = vpop.f32.mrb[0].mxu0
    %v480 = vadd.f32 0.0, %v479
    %v481 = vpop.f32.mrb[0].mxu0
    %482 = vdwg.mxu0
    %v483 = vadd.f32 %v395, %v480
    %v484 = vxor.u32 %v483, 2147483648
    %v485 = vmul.f32 %v484, 1.442695
    %v486 = vpow.pop %v485
    %v487 = vadd.f32 %v486, 1.0
    %v488 = vrcp.pop %v487
    %v489 = vmul.f32 1.0, %v488
    %v490 = vtanh.pop %v483
    %v491 = vmul.f32 %v489, 0.0
    %493 = vrot.lane.b32.xlu0 %v490, 96
    %v494 = vpop.permute.xlu0 %493
    %v496 = vmul.f32 %v489, %v494
    %498 = vrot.lane.b32.xlu0 %v496, 16
    %v499 = vpop.permute.xlu0 %498
    %v501 = vadd.f32 %v491, %v499
    %v502 = vtanh.pop %v501
    %504 = vrot.lane.b32.xlu0 %v502, 32
    %v505 = vpop.permute.xlu0 %504
    %v507 = vmul.f32 %v489, %v505
    %v508 = vld [vmem:[#allocation2] sm:$0xff]
    %v509 = vld [vmem:[#allocation2 + $0x8] sm:$0xff]
    %v510 = vld [vmem:[#allocation2 + $0x10] sm:$0xff]
    %v511 = vld [vmem:[#allocation2 + $0x18] sm:$0xff]
    %513 = vrot.lane.b32.xlu0 %v507, 80
    %v514 = vpop.permute.xlu0 %513
    %v515 = vsel %vm409, %v514, 0
    %517 = vmatprep.subr.mxu0 0.0
    %518 = vmatpush1.msra.mxu0 %v403
    %519 = vmatprep.subr.mxu0 0.0
    %520 = vmatpush1.msra.mxu0 %v404
    %521 = vmatprep.subr.mxu0 0.0
    %522 = vmatpush1.msra.mxu0 0.0
    %523 = vmatprep.subr.mxu0 0.0
    %524 = vmatpush1.msra.mxu0 0.0
    %525 = vmatprep.subr.mxu0 0.0
    %526 = vmatpush1.msra.mxu0 0.0
    %527 = vmatprep.subr.mxu0 0.0
    %528 = vmatpush1.msra.mxu0 0.0
    %529 = vmatprep.subr.mxu0 0.0
    %530 = vmatpush1.msra.mxu0 0.0
    %531 = vmatprep.subr.mxu0 0.0
    %532 = vmatpush1.msra.mxu0 0.0
    %533 = vmatprep.subr.mxu0 0.0
    %534 = vmatpush1.msra.mxu0 0.0
    %535 = vmatprep.subr.mxu0 0.0
    %536 = vmatpush1.msra.mxu0 0.0
    %537 = vmatprep.subr.mxu0 0.0
    %538 = vmatpush1.msra.mxu0 0.0
    %539 = vmatprep.subr.mxu0 0.0
    %540 = vmatpush1.msra.mxu0 0.0
    %541 = vmatprep.subr.mxu0 0.0
    %542 = vmatpush1.msra.mxu0 0.0
    %543 = vmatprep.subr.mxu0 0.0
    %544 = vmatpush1.msra.mxu0 0.0
    %545 = vmatprep.subr.mxu0 0.0
    %546 = vmatpush1.msra.mxu0 0.0
    %547 = vmatprep.subr.mxu0 0.0
    %548 = vmatpush1.msra.mxu0 0.0
    %549 = vmatprep.subr.mxu0 0.0
    %550 = vmatpush1.msra.mxu0 0.0
    %551 = vmatprep.subr.mxu0 0.0
    %552 = vmatpush1.msra.mxu0 0.0
    %553 = vmatprep.subr.mxu0 0.0
    %554 = vmatpush1.msra.mxu0 0.0
    %555 = vmatprep.subr.mxu0 0.0
    %556 = vmatpush1.msra.mxu0 0.0
    %557 = vmatprep.subr.mxu0 0.0
    %558 = vmatpush1.msra.mxu0 0.0
    %559 = vmatprep.subr.mxu0 0.0
    %560 = vmatpush1.msra.mxu0 0.0
    %561 = vmatprep.subr.mxu0 0.0
    %562 = vmatpush1.msra.mxu0 0.0
    %563 = vmatprep.subr.mxu0 0.0
    %564 = vmatpush1.msra.mxu0 0.0
    %565 = vmatprep.subr.mxu0 0.0
    %566 = vmatpush1.msra.mxu0 0.0
    %567 = vmatprep.subr.mxu0 0.0
    %568 = vmatpush1.msra.mxu0 0.0
    %569 = vmatprep.subr.mxu0 0.0
    %570 = vmatpush1.msra.mxu0 0.0
    %571 = vmatprep.subr.mxu0 0.0
    %572 = vmatpush1.msra.mxu0 0.0
    %573 = vmatprep.subr.mxu0 0.0
    %574 = vmatpush1.msra.mxu0 0.0
    %575 = vmatprep.subr.mxu0 0.0
    %576 = vmatpush1.msra.mxu0 0.0
    %577 = vmatprep.subr.mxu0 0.0
    %578 = vmatpush1.msra.mxu0 0.0
    %579 = vmatprep.subr.mxu0 0.0
    %580 = vmatpush1.msra.mxu0 0.0
    %581 = vmatprep.mubr.f32.mxu0 0.0
    %582 = vmatmul.mubr.f32.gmra.mrb[0].mxu0 %v515
    %v583 = vpop.f32.mrb[0].mxu0
    %v584 = vadd.f32 0.0, %v583
    %v585 = vpop.f32.mrb[0].mxu0
    %586 = vdwg.mxu0
    %v588 = vrot.slane %v584, 6
    %v590 = vadd.f32 %v395, %v588
    %v591 = vxor.u32 %v590, 2147483648
    %v592 = vmul.f32 %v591, 1.442695
    %v593 = vpow.pop %v592
    %v594 = vadd.f32 %v593, 1.0
    %v595 = vrcp.pop %v594
    %v596 = vmul.f32 1.0, %v595
    %v597 = vtanh.pop %v590
    %v599 = vrot.slane %v501, 6
    %v601 = vmul.f32 %v596, %v599
    %603 = vrot.lane.b32.xlu0 %v597, 96
    %v604 = vpop.permute.xlu0 %603
    %v606 = vmul.f32 %v596, %v604
    %608 = vrot.lane.b32.xlu0 %v606, 16
    %v609 = vpop.permute.xlu0 %608
    %v611 = vadd.f32 %v601, %v609
    %v612 = vtanh.pop %v611
    %614 = vrot.lane.b32.xlu0 %v612, 32
    %v615 = vpop.permute.xlu0 %614
    %v617 = vmul.f32 %v596, %v615
    %v618 = vld [vmem:[#allocation2 + $0x20] sm:$0xff]
    %v619 = vld [vmem:[#allocation2 + $0x28] sm:$0xff]
    %v620 = vld [vmem:[#allocation2 + $0x30] sm:$0xff]
    %v621 = vld [vmem:[#allocation2 + $0x38] sm:$0xff]
    %v623 = vrot.slane %v617, 2
    %624 = vrot.lane.b32.xlu0 %v623, 80
    %v625 = vpop.permute.xlu0 %624
    %v626 = vsel %vm409, %v625, 0
    %628 = vmatprep.subr.mxu0 %v619
    %629 = vmatpush1.msra.mxu0 %v618
    %630 = vmatprep.subr.mxu0 %v621
    %631 = vmatpush1.msra.mxu0 %v620
    %632 = vmatprep.subr.mxu0 0.0
    %633 = vmatpush1.msra.mxu0 0.0
    %634 = vmatprep.subr.mxu0 0.0
    %635 = vmatpush1.msra.mxu0 0.0
    %636 = vmatprep.subr.mxu0 0.0
    %637 = vmatpush1.msra.mxu0 0.0
    %638 = vmatprep.subr.mxu0 0.0
    %639 = vmatpush1.msra.mxu0 0.0
    %640 = vmatprep.subr.mxu0 0.0
    %641 = vmatpush1.msra.mxu0 0.0
    %642 = vmatprep.subr.mxu0 0.0
    %643 = vmatpush1.msra.mxu0 0.0
    %644 = vmatprep.subr.mxu0 0.0
    %645 = vmatpush1.msra.mxu0 0.0
    %646 = vmatprep.subr.mxu0 0.0
    %647 = vmatpush1.msra.mxu0 0.0
    %648 = vmatprep.subr.mxu0 0.0
    %649 = vmatpush1.msra.mxu0 0.0
    %650 = vmatprep.subr.mxu0 0.0
    %651 = vmatpush1.msra.mxu0 0.0
    %652 = vmatprep.subr.mxu0 0.0
    %653 = vmatpush1.msra.mxu0 0.0
    %654 = vmatprep.subr.mxu0 0.0
    %655 = vmatpush1.msra.mxu0 0.0
    %656 = vmatprep.subr.mxu0 0.0
    %657 = vmatpush1.msra.mxu0 0.0
    %658 = vmatprep.subr.mxu0 0.0
    %659 = vmatpush1.msra.mxu0 0.0
    %660 = vmatprep.subr.mxu0 0.0
    %661 = vmatpush1.msra.mxu0 0.0
    %662 = vmatprep.subr.mxu0 0.0
    %663 = vmatpush1.msra.mxu0 0.0
    %664 = vmatprep.subr.mxu0 0.0
    %665 = vmatpush1.msra.mxu0 0.0
    %666 = vmatprep.subr.mxu0 0.0
    %667 = vmatpush1.msra.mxu0 0.0
    %668 = vmatprep.subr.mxu0 0.0
    %669 = vmatpush1.msra.mxu0 0.0
    %670 = vmatprep.subr.mxu0 0.0
    %671 = vmatpush1.msra.mxu0 0.0
    %672 = vmatprep.subr.mxu0 0.0
    %673 = vmatpush1.msra.mxu0 0.0
    %674 = vmatprep.subr.mxu0 0.0
    %675 = vmatpush1.msra.mxu0 0.0
    %676 = vmatprep.subr.mxu0 0.0
    %677 = vmatpush1.msra.mxu0 0.0
    %678 = vmatprep.subr.mxu0 0.0
    %679 = vmatpush1.msra.mxu0 0.0
    %680 = vmatprep.subr.mxu0 0.0
    %681 = vmatpush1.msra.mxu0 0.0
    %682 = vmatprep.subr.mxu0 0.0
    %683 = vmatpush1.msra.mxu0 0.0
    %684 = vmatprep.subr.mxu0 0.0
    %685 = vmatpush1.msra.mxu0 0.0
    %686 = vmatprep.subr.mxu0 0.0
    %687 = vmatpush1.msra.mxu0 0.0
    %688 = vmatprep.subr.mxu0 0.0
    %689 = vmatpush1.msra.mxu0 0.0
    %690 = vmatprep.subr.mxu0 0.0
    %691 = vmatpush1.msra.mxu0 0.0
    %692 = vmatprep.mubr.f32.mxu0 0.0
    %693 = vmatmul.mubr.f32.gmra.mrb[0].mxu0 %v626
    %v694 = vpop.f32.mrb[0].mxu0
    %v695 = vadd.f32 0.0, %v694
    %v696 = vpop.f32.mrb[0].mxu0
    %v697 = vadd.f32 0.0, %v696
    %698 = vdwg.mxu0
    %699 = vmatprep.subr.mxu0 %v509
    %700 = vmatpush1.msra.mxu0 %v508
    %701 = vmatprep.subr.mxu0 %v511
    %702 = vmatpush1.msra.mxu0 %v510
    %703 = vmatprep.subr.mxu0 0.0
    %704 = vmatpush1.msra.mxu0 0.0
    %705 = vmatprep.subr.mxu0 0.0
    %706 = vmatpush1.msra.mxu0 0.0
    %707 = vmatprep.subr.mxu0 0.0
    %708 = vmatpush1.msra.mxu0 0.0
    %709 = vmatprep.subr.mxu0 0.0
    %710 = vmatpush1.msra.mxu0 0.0
    %711 = vmatprep.subr.mxu0 0.0
    %712 = vmatpush1.msra.mxu0 0.0
    %713 = vmatprep.subr.mxu0 0.0
    %714 = vmatpush1.msra.mxu0 0.0
    %715 = vmatprep.subr.mxu0 0.0
    %716 = vmatpush1.msra.mxu0 0.0
    %717 = vmatprep.subr.mxu0 0.0
    %718 = vmatpush1.msra.mxu0 0.0
    %719 = vmatprep.subr.mxu0 0.0
    %720 = vmatpush1.msra.mxu0 0.0
    %721 = vmatprep.subr.mxu0 0.0
    %722 = vmatpush1.msra.mxu0 0.0
    %723 = vmatprep.subr.mxu0 0.0
    %724 = vmatpush1.msra.mxu0 0.0
    %725 = vmatprep.subr.mxu0 0.0
    %726 = vmatpush1.msra.mxu0 0.0
    %727 = vmatprep.subr.mxu0 0.0
    %728 = vmatpush1.msra.mxu0 0.0
    %729 = vmatprep.subr.mxu0 0.0
    %730 = vmatpush1.msra.mxu0 0.0
    %731 = vmatprep.subr.mxu0 0.0
    %732 = vmatpush1.msra.mxu0 0.0
    %733 = vmatprep.subr.mxu0 0.0
    %734 = vmatpush1.msra.mxu0 0.0
    %735 = vmatprep.subr.mxu0 0.0
    %736 = vmatpush1.msra.mxu0 0.0
    %737 = vmatprep.subr.mxu0 0.0
    %738 = vmatpush1.msra.mxu0 0.0
    %739 = vmatprep.subr.mxu0 0.0
    %740 = vmatpush1.msra.mxu0 0.0
    %741 = vmatprep.subr.mxu0 0.0
    %742 = vmatpush1.msra.mxu0 0.0
    %743 = vmatprep.subr.mxu0 0.0
    %744 = vmatpush1.msra.mxu0 0.0
    %745 = vmatprep.subr.mxu0 0.0
    %746 = vmatpush1.msra.mxu0 0.0
    %747 = vmatprep.subr.mxu0 0.0
    %748 = vmatpush1.msra.mxu0 0.0
    %749 = vmatprep.subr.mxu0 0.0
    %750 = vmatpush1.msra.mxu0 0.0
    %751 = vmatprep.subr.mxu0 0.0
    %752 = vmatpush1.msra.mxu0 0.0
    %753 = vmatprep.subr.mxu0 0.0
    %754 = vmatpush1.msra.mxu0 0.0
    %755 = vmatprep.subr.mxu0 0.0
    %756 = vmatpush1.msra.mxu0 0.0
    %757 = vmatprep.subr.mxu0 0.0
    %758 = vmatpush1.msra.mxu0 0.0
    %759 = vmatprep.subr.mxu0 0.0
    %760 = vmatpush1.msra.mxu0 0.0
    %761 = vmatprep.subr.mxu0 0.0
    %762 = vmatpush1.msra.mxu0 0.0
    %763 = vmatprep.mubr.f32.mxu0 0.0
    %764 = vmatmul.mubr.f32.gmra.mrb[0].mxu0 %v515
    %v765 = vpop.f32.mrb[0].mxu0
    %v766 = vadd.f32 %v695, %v765
    %v767 = vpop.f32.mrb[0].mxu0
    %v768 = vadd.f32 %v697, %v767
    %769 = vdwg.mxu0
    %770 = vmatprep.subr.mxu0 0.0
    %771 = vmatpush1.msra.mxu0 %v403
    %772 = vmatprep.subr.mxu0 0.0
    %773 = vmatpush1.msra.mxu0 %v404
    %774 = vmatprep.subr.mxu0 0.0
    %775 = vmatpush1.msra.mxu0 0.0
    %776 = vmatprep.subr.mxu0 0.0
    %777 = vmatpush1.msra.mxu0 0.0
    %778 = vmatprep.subr.mxu0 0.0
    %779 = vmatpush1.msra.mxu0 0.0
    %780 = vmatprep.subr.mxu0 0.0
    %781 = vmatpush1.msra.mxu0 0.0
    %782 = vmatprep.subr.mxu0 0.0
    %783 = vmatpush1.msra.mxu0 0.0
    %784 = vmatprep.subr.mxu0 0.0
    %785 = vmatpush1.msra.mxu0 0.0
    %786 = vmatprep.subr.mxu0 0.0
    %787 = vmatpush1.msra.mxu0 0.0
    %788 = vmatprep.subr.mxu0 0.0
    %789 = vmatpush1.msra.mxu0 0.0
    %790 = vmatprep.subr.mxu0 0.0
    %791 = vmatpush1.msra.mxu0 0.0
    %792 = vmatprep.subr.mxu0 0.0
    %793 = vmatpush1.msra.mxu0 0.0
    %794 = vmatprep.subr.mxu0 0.0
    %795 = vmatpush1.msra.mxu0 0.0
    %796 = vmatprep.subr.mxu0 0.0
    %797 = vmatpush1.msra.mxu0 0.0
    %798 = vmatprep.subr.mxu0 0.0
    %799 = vmatpush1.msra.mxu0 0.0
    %800 = vmatprep.subr.mxu0 0.0
    %801 = vmatpush1.msra.mxu0 0.0
    %802 = vmatprep.subr.mxu0 0.0
    %803 = vmatpush1.msra.mxu0 0.0
    %804 = vmatprep.subr.mxu0 0.0
    %805 = vmatpush1.msra.mxu0 0.0
    %806 = vmatprep.subr.mxu0 0.0
    %807 = vmatpush1.msra.mxu0 0.0
    %808 = vmatprep.subr.mxu0 0.0
    %809 = vmatpush1.msra.mxu0 0.0
    %810 = vmatprep.subr.mxu0 0.0
    %811 = vmatpush1.msra.mxu0 0.0
    %812 = vmatprep.subr.mxu0 0.0
    %813 = vmatpush1.msra.mxu0 0.0
    %814 = vmatprep.subr.mxu0 0.0
    %815 = vmatpush1.msra.mxu0 0.0
    %816 = vmatprep.subr.mxu0 0.0
    %817 = vmatpush1.msra.mxu0 0.0
    %818 = vmatprep.subr.mxu0 0.0
    %819 = vmatpush1.msra.mxu0 0.0
    %820 = vmatprep.subr.mxu0 0.0
    %821 = vmatpush1.msra.mxu0 0.0
    %822 = vmatprep.subr.mxu0 0.0
    %823 = vmatpush1.msra.mxu0 0.0
    %824 = vmatprep.subr.mxu0 0.0
    %825 = vmatpush1.msra.mxu0 0.0
    %826 = vmatprep.subr.mxu0 0.0
    %827 = vmatpush1.msra.mxu0 0.0
    %828 = vmatprep.subr.mxu0 0.0
    %829 = vmatpush1.msra.mxu0 0.0
    %830 = vmatprep.subr.mxu0 0.0
    %831 = vmatpush1.msra.mxu0 0.0
    %832 = vmatprep.subr.mxu0 0.0
    %833 = vmatpush1.msra.mxu0 0.0
    %834 = vmatprep.mubr.f32.mxu0 0.0
    %835 = vmatmul.mubr.f32.gmra.mrb[0].mxu0 %v626
    %v836 = vpop.f32.mrb[0].mxu0
    %v837 = vadd.f32 0.0, %v836
    %v838 = vpop.f32.mrb[0].mxu0
    %839 = vdwg.mxu0
    %v841 = vrot.slane %v837, 4
    %v843 = vadd.f32 %v395, %v841
    %v844 = vxor.u32 %v843, 2147483648
    %v845 = vmul.f32 %v844, 1.442695
    %v846 = vpow.pop %v845
    %v847 = vadd.f32 %v846, 1.0
    %v848 = vrcp.pop %v847
    %v849 = vmul.f32 1.0, %v848
    %v850 = vtanh.pop %v843
    %v852 = vrot.slane %v611, 6
    %v854 = vmul.f32 %v849, %v852
    %856 = vrot.lane.b32.xlu0 %v850, 96
    %v857 = vpop.permute.xlu0 %856
    %v859 = vmul.f32 %v849, %v857
    %861 = vrot.lane.b32.xlu0 %v859, 16
    %v862 = vpop.permute.xlu0 %861
    %v864 = vadd.f32 %v854, %v862
    %v865 = vtanh.pop %v864
    %867 = vrot.lane.b32.xlu0 %v865, 32
    %v868 = vpop.permute.xlu0 %867
    %v870 = vmul.f32 %v849, %v868
    %v871 = vld [vmem:[#allocation2 + $0x40] sm:$0xff]
    %v872 = vld [vmem:[#allocation2 + $0x48] sm:$0xff]
    %v873 = vld [vmem:[#allocation2 + $0x50] sm:$0xff]
    %v874 = vld [vmem:[#allocation2 + $0x58] sm:$0xff]
    %v876 = vrot.slane %v870, 4
    %877 = vrot.lane.b32.xlu0 %v876, 80
    %v878 = vpop.permute.xlu0 %877
    %v879 = vsel %vm409, %v878, 0
    %881 = vmatprep.subr.mxu0 %v872
    %882 = vmatpush1.msra.mxu0 %v871
    %883 = vmatprep.subr.mxu0 %v874
    %884 = vmatpush1.msra.mxu0 %v873
    %885 = vmatprep.subr.mxu0 0.0
    %886 = vmatpush1.msra.mxu0 0.0
    %887 = vmatprep.subr.mxu0 0.0
    %888 = vmatpush1.msra.mxu0 0.0
    %889 = vmatprep.subr.mxu0 0.0
    %890 = vmatpush1.msra.mxu0 0.0
    %891 = vmatprep.subr.mxu0 0.0
    %892 = vmatpush1.msra.mxu0 0.0
    %893 = vmatprep.subr.mxu0 0.0
    %894 = vmatpush1.msra.mxu0 0.0
    %895 = vmatprep.subr.mxu0 0.0
    %896 = vmatpush1.msra.mxu0 0.0
    %897 = vmatprep.subr.mxu0 0.0
    %898 = vmatpush1.msra.mxu0 0.0
    %899 = vmatprep.subr.mxu0 0.0
    %900 = vmatpush1.msra.mxu0 0.0
    %901 = vmatprep.subr.mxu0 0.0
    %902 = vmatpush1.msra.mxu0 0.0
    %903 = vmatprep.subr.mxu0 0.0
    %904 = vmatpush1.msra.mxu0 0.0
    %905 = vmatprep.subr.mxu0 0.0
    %906 = vmatpush1.msra.mxu0 0.0
    %907 = vmatprep.subr.mxu0 0.0
    %908 = vmatpush1.msra.mxu0 0.0
    %909 = vmatprep.subr.mxu0 0.0
    %910 = vmatpush1.msra.mxu0 0.0
    %911 = vmatprep.subr.mxu0 0.0
    %912 = vmatpush1.msra.mxu0 0.0
    %913 = vmatprep.subr.mxu0 0.0
    %914 = vmatpush1.msra.mxu0 0.0
    %915 = vmatprep.subr.mxu0 0.0
    %916 = vmatpush1.msra.mxu0 0.0
    %917 = vmatprep.subr.mxu0 0.0
    %918 = vmatpush1.msra.mxu0 0.0
    %919 = vmatprep.subr.mxu0 0.0
    %920 = vmatpush1.msra.mxu0 0.0
    %921 = vmatprep.subr.mxu0 0.0
    %922 = vmatpush1.msra.mxu0 0.0
    %923 = vmatprep.subr.mxu0 0.0
    %924 = vmatpush1.msra.mxu0 0.0
    %925 = vmatprep.subr.mxu0 0.0
    %926 = vmatpush1.msra.mxu0 0.0
    %927 = vmatprep.subr.mxu0 0.0
    %928 = vmatpush1.msra.mxu0 0.0
    %929 = vmatprep.subr.mxu0 0.0
    %930 = vmatpush1.msra.mxu0 0.0
    %931 = vmatprep.subr.mxu0 0.0
    %932 = vmatpush1.msra.mxu0 0.0
    %933 = vmatprep.subr.mxu0 0.0
    %934 = vmatpush1.msra.mxu0 0.0
    %935 = vmatprep.subr.mxu0 0.0
    %936 = vmatpush1.msra.mxu0 0.0
    %937 = vmatprep.subr.mxu0 0.0
    %938 = vmatpush1.msra.mxu0 0.0
    %939 = vmatprep.subr.mxu0 0.0
    %940 = vmatpush1.msra.mxu0 0.0
    %941 = vmatprep.subr.mxu0 0.0
    %942 = vmatpush1.msra.mxu0 0.0
    %943 = vmatprep.subr.mxu0 0.0
    %944 = vmatpush1.msra.mxu0 0.0
    %945 = vmatprep.mubr.f32.mxu0 0.0
    %946 = vmatmul.mubr.f32.gmra.mrb[0].mxu0 %v879
    %v947 = vpop.f32.mrb[0].mxu0
    %v948 = vadd.f32 0.0, %v947
    %v949 = vpop.f32.mrb[0].mxu0
    %v950 = vadd.f32 0.0, %v949
    %951 = vdwg.mxu0
    %v952 = vadd.f32 %v766, %v948
    %v953 = vadd.f32 %v768, %v950
    %954 = vmatprep.subr.mxu0 0.0
    %955 = vmatpush1.msra.mxu0 %v403
    %956 = vmatprep.subr.mxu0 0.0
    %957 = vmatpush1.msra.mxu0 %v404
    %958 = vmatprep.subr.mxu0 0.0
    %959 = vmatpush1.msra.mxu0 0.0
    %960 = vmatprep.subr.mxu0 0.0
    %961 = vmatpush1.msra.mxu0 0.0
    %962 = vmatprep.subr.mxu0 0.0
    %963 = vmatpush1.msra.mxu0 0.0
    %964 = vmatprep.subr.mxu0 0.0
    %965 = vmatpush1.msra.mxu0 0.0
    %966 = vmatprep.subr.mxu0 0.0
    %967 = vmatpush1.msra.mxu0 0.0
    %968 = vmatprep.subr.mxu0 0.0
    %969 = vmatpush1.msra.mxu0 0.0
    %970 = vmatprep.subr.mxu0 0.0
    %971 = vmatpush1.msra.mxu0 0.0
    %972 = vmatprep.subr.mxu0 0.0
    %973 = vmatpush1.msra.mxu0 0.0
    %974 = vmatprep.subr.mxu0 0.0
    %975 = vmatpush1.msra.mxu0 0.0
    %976 = vmatprep.subr.mxu0 0.0
    %977 = vmatpush1.msra.mxu0 0.0
    %978 = vmatprep.subr.mxu0 0.0
    %979 = vmatpush1.msra.mxu0 0.0
    %980 = vmatprep.subr.mxu0 0.0
    %981 = vmatpush1.msra.mxu0 0.0
    %982 = vmatprep.subr.mxu0 0.0
    %983 = vmatpush1.msra.mxu0 0.0
    %984 = vmatprep.subr.mxu0 0.0
    %985 = vmatpush1.msra.mxu0 0.0
    %986 = vmatprep.subr.mxu0 0.0
    %987 = vmatpush1.msra.mxu0 0.0
    %988 = vmatprep.subr.mxu0 0.0
    %989 = vmatpush1.msra.mxu0 0.0
    %990 = vmatprep.subr.mxu0 0.0
    %991 = vmatpush1.msra.mxu0 0.0
    %992 = vmatprep.subr.mxu0 0.0
    %993 = vmatpush1.msra.mxu0 0.0
    %994 = vmatprep.subr.mxu0 0.0
    %995 = vmatpush1.msra.mxu0 0.0
    %996 = vmatprep.subr.mxu0 0.0
    %997 = vmatpush1.msra.mxu0 0.0
    %998 = vmatprep.subr.mxu0 0.0
    %999 = vmatpush1.msra.mxu0 0.0
    %1000 = vmatprep.subr.mxu0 0.0
    %1001 = vmatpush1.msra.mxu0 0.0
    %1002 = vmatprep.subr.mxu0 0.0
    %1003 = vmatpush1.msra.mxu0 0.0
    %1004 = vmatprep.subr.mxu0 0.0
    %1005 = vmatpush1.msra.mxu0 0.0
    %1006 = vmatprep.subr.mxu0 0.0
    %1007 = vmatpush1.msra.mxu0 0.0
    %1008 = vmatprep.subr.mxu0 0.0
    %1009 = vmatpush1.msra.mxu0 0.0
    %1010 = vmatprep.subr.mxu0 0.0
    %1011 = vmatpush1.msra.mxu0 0.0
    %1012 = vmatprep.subr.mxu0 0.0
    %1013 = vmatpush1.msra.mxu0 0.0
    %1014 = vmatprep.subr.mxu0 0.0
    %1015 = vmatpush1.msra.mxu0 0.0
    %1016 = vmatprep.subr.mxu0 0.0
    %1017 = vmatpush1.msra.mxu0 0.0
    %1018 = vmatprep.mubr.f32.mxu0 0.0
    %1019 = vmatmul.mubr.f32.gmra.mrb[0].mxu0 %v879
    %v1020 = vpop.f32.mrb[0].mxu0
    %v1021 = vadd.f32 0.0, %v1020
    %v1022 = vpop.f32.mrb[0].mxu0
    %1023 = vdwg.mxu0
    %v1025 = vrot.slane %v1021, 2
    %v1027 = vadd.f32 %v395, %v1025
    %v1028 = vxor.u32 %v1027, 2147483648
    %v1029 = vmul.f32 %v1028, 1.442695
    %v1030 = vpow.pop %v1029
    %v1031 = vadd.f32 %v1030, 1.0
    %v1032 = vrcp.pop %v1031
    %v1033 = vmul.f32 1.0, %v1032
    %v1034 = vtanh.pop %v1027
    %v1036 = vrot.slane %v864, 6
    %v1038 = vmul.f32 %v1033, %v1036
    %1040 = vrot.lane.b32.xlu0 %v1034, 96
    %v1041 = vpop.permute.xlu0 %1040
    %v1043 = vmul.f32 %v1033, %v1041
    %1045 = vrot.lane.b32.xlu0 %v1043, 16
    %v1046 = vpop.permute.xlu0 %1045
    %v1048 = vadd.f32 %v1038, %v1046
    %v1049 = vtanh.pop %v1048
    %1051 = vrot.lane.b32.xlu0 %v1049, 32
    %v1052 = vpop.permute.xlu0 %1051
    %v1054 = vmul.f32 %v1033, %v1052
    %v1055 = vld [vmem:[#allocation2 + $0x60] sm:$0xff]
    %v1056 = vld [vmem:[#allocation2 + $0x68] sm:$0xff]
    %v1057 = vld [vmem:[#allocation2 + $0x70] sm:$0xff]
    %v1058 = vld [vmem:[#allocation2 + $0x78] sm:$0xff]
    %v1060 = vrot.slane %v1054, 6
    %1061 = vrot.lane.b32.xlu0 %v1060, 80
    %v1062 = vpop.permute.xlu0 %1061
    %v1063 = vsel %vm409, %v1062, 0
    %1065 = vmatprep.subr.mxu0 %v1056
    %1066 = vmatpush1.msra.mxu0 %v1055
    %1067 = vmatprep.subr.mxu0 %v1058
    %1068 = vmatpush1.msra.mxu0 %v1057
    %1069 = vmatprep.subr.mxu0 0.0
    %1070 = vmatpush1.msra.mxu0 0.0
    %1071 = vmatprep.subr.mxu0 0.0
    %1072 = vmatpush1.msra.mxu0 0.0
    %1073 = vmatprep.subr.mxu0 0.0
    %1074 = vmatpush1.msra.mxu0 0.0
    %1075 = vmatprep.subr.mxu0 0.0
    %1076 = vmatpush1.msra.mxu0 0.0
    %1077 = vmatprep.subr.mxu0 0.0
    %1078 = vmatpush1.msra.mxu0 0.0
    %1079 = vmatprep.subr.mxu0 0.0
    %1080 = vmatpush1.msra.mxu0 0.0
    %1081 = vmatprep.subr.mxu0 0.0
    %1082 = vmatpush1.msra.mxu0 0.0
    %1083 = vmatprep.subr.mxu0 0.0
    %1084 = vmatpush1.msra.mxu0 0.0
    %1085 = vmatprep.subr.mxu0 0.0
    %1086 = vmatpush1.msra.mxu0 0.0
    %1087 = vmatprep.subr.mxu0 0.0
    %1088 = vmatpush1.msra.mxu0 0.0
    %1089 = vmatprep.subr.mxu0 0.0
    %1090 = vmatpush1.msra.mxu0 0.0
    %1091 = vmatprep.subr.mxu0 0.0
    %1092 = vmatpush1.msra.mxu0 0.0
    %1093 = vmatprep.subr.mxu0 0.0
    %1094 = vmatpush1.msra.mxu0 0.0
    %1095 = vmatprep.subr.mxu0 0.0
    %1096 = vmatpush1.msra.mxu0 0.0
    %1097 = vmatprep.subr.mxu0 0.0
    %1098 = vmatpush1.msra.mxu0 0.0
    %1099 = vmatprep.subr.mxu0 0.0
    %1100 = vmatpush1.msra.mxu0 0.0
    %1101 = vmatprep.subr.mxu0 0.0
    %1102 = vmatpush1.msra.mxu0 0.0
    %1103 = vmatprep.subr.mxu0 0.0
    %1104 = vmatpush1.msra.mxu0 0.0
    %1105 = vmatprep.subr.mxu0 0.0
    %1106 = vmatpush1.msra.mxu0 0.0
    %1107 = vmatprep.subr.mxu0 0.0
    %1108 = vmatpush1.msra.mxu0 0.0
    %1109 = vmatprep.subr.mxu0 0.0
    %1110 = vmatpush1.msra.mxu0 0.0
    %1111 = vmatprep.subr.mxu0 0.0
    %1112 = vmatpush1.msra.mxu0 0.0
    %1113 = vmatprep.subr.mxu0 0.0
    %1114 = vmatpush1.msra.mxu0 0.0
    %1115 = vmatprep.subr.mxu0 0.0
    %1116 = vmatpush1.msra.mxu0 0.0
    %1117 = vmatprep.subr.mxu0 0.0
    %1118 = vmatpush1.msra.mxu0 0.0
    %1119 = vmatprep.subr.mxu0 0.0
    %1120 = vmatpush1.msra.mxu0 0.0
    %1121 = vmatprep.subr.mxu0 0.0
    %1122 = vmatpush1.msra.mxu0 0.0
    %1123 = vmatprep.subr.mxu0 0.0
    %1124 = vmatpush1.msra.mxu0 0.0
    %1125 = vmatprep.subr.mxu0 0.0
    %1126 = vmatpush1.msra.mxu0 0.0
    %1127 = vmatprep.subr.mxu0 0.0
    %1128 = vmatpush1.msra.mxu0 0.0
    %1129 = vmatprep.mubr.f32.mxu0 0.0
    %1130 = vmatmul.mubr.f32.gmra.mrb[0].mxu0 %v1063
    %v1131 = vpop.f32.mrb[0].mxu0
    %v1132 = vadd.f32 0.0, %v1131
    %v1133 = vpop.f32.mrb[0].mxu0
    %v1134 = vadd.f32 0.0, %v1133
    %1135 = vdwg.mxu0
    %v1136 = vadd.f32 %v952, %v1132
    %v1137 = vadd.f32 %v953, %v1134
    %1138 = vmatprep.subr.mxu0 0.0
    %1139 = vmatpush1.msra.mxu0 %v403
    %1140 = vmatprep.subr.mxu0 0.0
    %1141 = vmatpush1.msra.mxu0 %v404
    %1142 = vmatprep.subr.mxu0 0.0
    %1143 = vmatpush1.msra.mxu0 0.0
    %1144 = vmatprep.subr.mxu0 0.0
    %1145 = vmatpush1.msra.mxu0 0.0
    %1146 = vmatprep.subr.mxu0 0.0
    %1147 = vmatpush1.msra.mxu0 0.0
    %1148 = vmatprep.subr.mxu0 0.0
    %1149 = vmatpush1.msra.mxu0 0.0
    %1150 = vmatprep.subr.mxu0 0.0
    %1151 = vmatpush1.msra.mxu0 0.0
    %1152 = vmatprep.subr.mxu0 0.0
    %1153 = vmatpush1.msra.mxu0 0.0
    %1154 = vmatprep.subr.mxu0 0.0
    %1155 = vmatpush1.msra.mxu0 0.0
    %1156 = vmatprep.subr.mxu0 0.0
    %1157 = vmatpush1.msra.mxu0 0.0
    %1158 = vmatprep.subr.mxu0 0.0
    %1159 = vmatpush1.msra.mxu0 0.0
    %1160 = vmatprep.subr.mxu0 0.0
    %1161 = vmatpush1.msra.mxu0 0.0
    %1162 = vmatprep.subr.mxu0 0.0
    %1163 = vmatpush1.msra.mxu0 0.0
    %1164 = vmatprep.subr.mxu0 0.0
    %1165 = vmatpush1.msra.mxu0 0.0
    %1166 = vmatprep.subr.mxu0 0.0
    %1167 = vmatpush1.msra.mxu0 0.0
    %1168 = vmatprep.subr.mxu0 0.0
    %1169 = vmatpush1.msra.mxu0 0.0
    %1170 = vmatprep.subr.mxu0 0.0
    %1171 = vmatpush1.msra.mxu0 0.0
    %1172 = vmatprep.subr.mxu0 0.0
    %1173 = vmatpush1.msra.mxu0 0.0
    %1174 = vmatprep.subr.mxu0 0.0
    %1175 = vmatpush1.msra.mxu0 0.0
    %1176 = vmatprep.subr.mxu0 0.0
    %1177 = vmatpush1.msra.mxu0 0.0
    %1178 = vmatprep.subr.mxu0 0.0
    %1179 = vmatpush1.msra.mxu0 0.0
    %1180 = vmatprep.subr.mxu0 0.0
    %1181 = vmatpush1.msra.mxu0 0.0
    %1182 = vmatprep.subr.mxu0 0.0
    %1183 = vmatpush1.msra.mxu0 0.0
    %1184 = vmatprep.subr.mxu0 0.0
    %1185 = vmatpush1.msra.mxu0 0.0
    %1186 = vmatprep.subr.mxu0 0.0
    %1187 = vmatpush1.msra.mxu0 0.0
    %1188 = vmatprep.subr.mxu0 0.0
    %1189 = vmatpush1.msra.mxu0 0.0
    %1190 = vmatprep.subr.mxu0 0.0
    %1191 = vmatpush1.msra.mxu0 0.0
    %1192 = vmatprep.subr.mxu0 0.0
    %1193 = vmatpush1.msra.mxu0 0.0
    %1194 = vmatprep.subr.mxu0 0.0
    %1195 = vmatpush1.msra.mxu0 0.0
    %1196 = vmatprep.subr.mxu0 0.0
    %1197 = vmatpush1.msra.mxu0 0.0
    %1198 = vmatprep.subr.mxu0 0.0
    %1199 = vmatpush1.msra.mxu0 0.0
    %1200 = vmatprep.subr.mxu0 0.0
    %1201 = vmatpush1.msra.mxu0 0.0
    %1202 = vmatprep.mubr.f32.mxu0 0.0
    %1203 = vmatmul.mubr.f32.gmra.mrb[0].mxu0 %v1063
    %v1204 = vpop.f32.mrb[0].mxu0
    %v1205 = vadd.f32 0.0, %v1204
    %v1206 = vpop.f32.mrb[0].mxu0
    %1207 = vdwg.mxu0
    %v1208 = vadd.f32 %v400, %v1205
    %v1209 = vxor.u32 %v1208, 2147483648
    %v1210 = vmul.f32 %v1209, 1.442695
    %v1211 = vpow.pop %v1210
    %v1212 = vadd.f32 %v1211, 1.0
    %v1213 = vrcp.pop %v1212
    %v1214 = vmul.f32 1.0, %v1213
    %v1215 = vtanh.pop %v1208
    %v1217 = vrot.slane %v1048, 6
    %v1219 = vmul.f32 %v1214, %v1217
    %1221 = vrot.lane.b32.xlu0 %v1215, 96
    %v1222 = vpop.permute.xlu0 %1221
    %v1224 = vmul.f32 %v1214, %v1222
    %1226 = vrot.lane.b32.xlu0 %v1224, 16
    %v1227 = vpop.permute.xlu0 %1226
    %v1229 = vadd.f32 %v1219, %v1227
    %v1230 = vtanh.pop %v1229
    %1232 = vrot.lane.b32.xlu0 %v1230, 32
    %v1233 = vpop.permute.xlu0 %1232
    %v1235 = vmul.f32 %v1214, %v1233
    %v1236 = vld [vmem:[#allocation2 + $0x80] sm:$0xff]
    %v1237 = vld [vmem:[#allocation2 + $0x88] sm:$0xff]
    %v1238 = vld [vmem:[#allocation2 + $0x90] sm:$0xff]
    %v1239 = vld [vmem:[#allocation2 + $0x98] sm:$0xff]
    %1241 = vrot.lane.b32.xlu0 %v1235, 80
    %v1242 = vpop.permute.xlu0 %1241
    %v1243 = vsel %vm409, %v1242, 0
    %1245 = vmatprep.subr.mxu0 %v1237
    %1246 = vmatpush1.msra.mxu0 %v1236
    %1247 = vmatprep.subr.mxu0 %v1239
    %1248 = vmatpush1.msra.mxu0 %v1238
    %1249 = vmatprep.subr.mxu0 0.0
    %1250 = vmatpush1.msra.mxu0 0.0
    %1251 = vmatprep.subr.mxu0 0.0
    %1252 = vmatpush1.msra.mxu0 0.0
    %1253 = vmatprep.subr.mxu0 0.0
    %1254 = vmatpush1.msra.mxu0 0.0
    %1255 = vmatprep.subr.mxu0 0.0
    %1256 = vmatpush1.msra.mxu0 0.0
    %1257 = vmatprep.subr.mxu0 0.0
    %1258 = vmatpush1.msra.mxu0 0.0
    %1259 = vmatprep.subr.mxu0 0.0
    %1260 = vmatpush1.msra.mxu0 0.0
    %1261 = vmatprep.subr.mxu0 0.0
    %1262 = vmatpush1.msra.mxu0 0.0
    %1263 = vmatprep.subr.mxu0 0.0
    %1264 = vmatpush1.msra.mxu0 0.0
    %1265 = vmatprep.subr.mxu0 0.0
    %1266 = vmatpush1.msra.mxu0 0.0
    %1267 = vmatprep.subr.mxu0 0.0
    %1268 = vmatpush1.msra.mxu0 0.0
    %1269 = vmatprep.subr.mxu0 0.0
    %1270 = vmatpush1.msra.mxu0 0.0
    %1271 = vmatprep.subr.mxu0 0.0
    %1272 = vmatpush1.msra.mxu0 0.0
    %1273 = vmatprep.subr.mxu0 0.0
    %1274 = vmatpush1.msra.mxu0 0.0
    %1275 = vmatprep.subr.mxu0 0.0
    %1276 = vmatpush1.msra.mxu0 0.0
    %1277 = vmatprep.subr.mxu0 0.0
    %1278 = vmatpush1.msra.mxu0 0.0
    %1279 = vmatprep.subr.mxu0 0.0
    %1280 = vmatpush1.msra.mxu0 0.0
    %1281 = vmatprep.subr.mxu0 0.0
    %1282 = vmatpush1.msra.mxu0 0.0
    %1283 = vmatprep.subr.mxu0 0.0
    %1284 = vmatpush1.msra.mxu0 0.0
    %1285 = vmatprep.subr.mxu0 0.0
    %1286 = vmatpush1.msra.mxu0 0.0
    %1287 = vmatprep.subr.mxu0 0.0
    %1288 = vmatpush1.msra.mxu0 0.0
    %1289 = vmatprep.subr.mxu0 0.0
    %1290 = vmatpush1.msra.mxu0 0.0
    %1291 = vmatprep.subr.mxu0 0.0
    %1292 = vmatpush1.msra.mxu0 0.0
    %1293 = vmatprep.subr.mxu0 0.0
    %1294 = vmatpush1.msra.mxu0 0.0
    %1295 = vmatprep.subr.mxu0 0.0
    %1296 = vmatpush1.msra.mxu0 0.0
    %1297 = vmatprep.subr.mxu0 0.0
    %1298 = vmatpush1.msra.mxu0 0.0
    %1299 = vmatprep.subr.mxu0 0.0
    %1300 = vmatpush1.msra.mxu0 0.0
    %1301 = vmatprep.subr.mxu0 0.0
    %1302 = vmatpush1.msra.mxu0 0.0
    %1303 = vmatprep.subr.mxu0 0.0
    %1304 = vmatpush1.msra.mxu0 0.0
    %1305 = vmatprep.subr.mxu0 0.0
    %1306 = vmatpush1.msra.mxu0 0.0
    %1307 = vmatprep.subr.mxu0 0.0
    %1308 = vmatpush1.msra.mxu0 0.0
    %1309 = vmatprep.mubr.f32.mxu0 0.0
    %1310 = vmatmul.mubr.f32.gmra.mrb[0].mxu0 %v1243
    %v1311 = vpop.f32.mrb[0].mxu0
    %v1312 = vadd.f32 0.0, %v1311
    %v1313 = vpop.f32.mrb[0].mxu0
    %v1314 = vadd.f32 0.0, %v1313
    %1315 = vdwg.mxu0
    %v1316 = vadd.f32 %v1136, %v1312
    %v1317 = vadd.f32 %v1137, %v1314
    %1318 = vmatprep.subr.mxu0 0.0
    %1319 = vmatpush1.msra.mxu0 %v403
    %1320 = vmatprep.subr.mxu0 0.0
    %1321 = vmatpush1.msra.mxu0 %v404
    %1322 = vmatprep.subr.mxu0 0.0
    %1323 = vmatpush1.msra.mxu0 0.0
    %1324 = vmatprep.subr.mxu0 0.0
    %1325 = vmatpush1.msra.mxu0 0.0
    %1326 = vmatprep.subr.mxu0 0.0
    %1327 = vmatpush1.msra.mxu0 0.0
    %1328 = vmatprep.subr.mxu0 0.0
    %1329 = vmatpush1.msra.mxu0 0.0
    %1330 = vmatprep.subr.mxu0 0.0
    %1331 = vmatpush1.msra.mxu0 0.0
    %1332 = vmatprep.subr.mxu0 0.0
    %1333 = vmatpush1.msra.mxu0 0.0
    %1334 = vmatprep.subr.mxu0 0.0
    %1335 = vmatpush1.msra.mxu0 0.0
    %1336 = vmatprep.subr.mxu0 0.0
    %1337 = vmatpush1.msra.mxu0 0.0
    %1338 = vmatprep.subr.mxu0 0.0
    %1339 = vmatpush1.msra.mxu0 0.0
    %1340 = vmatprep.subr.mxu0 0.0
    %1341 = vmatpush1.msra.mxu0 0.0
    %1342 = vmatprep.subr.mxu0 0.0
    %1343 = vmatpush1.msra.mxu0 0.0
    %1344 = vmatprep.subr.mxu0 0.0
    %1345 = vmatpush1.msra.mxu0 0.0
    %1346 = vmatprep.subr.mxu0 0.0
    %1347 = vmatpush1.msra.mxu0 0.0
    %1348 = vmatprep.subr.mxu0 0.0
    %1349 = vmatpush1.msra.mxu0 0.0
    %1350 = vmatprep.subr.mxu0 0.0
    %1351 = vmatpush1.msra.mxu0 0.0
    %1352 = vmatprep.subr.mxu0 0.0
    %1353 = vmatpush1.msra.mxu0 0.0
    %1354 = vmatprep.subr.mxu0 0.0
    %1355 = vmatpush1.msra.mxu0 0.0
    %1356 = vmatprep.subr.mxu0 0.0
    %1357 = vmatpush1.msra.mxu0 0.0
    %1358 = vmatprep.subr.mxu0 0.0
    %1359 = vmatpush1.msra.mxu0 0.0
    %1360 = vmatprep.subr.mxu0 0.0
    %1361 = vmatpush1.msra.mxu0 0.0
    %1362 = vmatprep.subr.mxu0 0.0
    %1363 = vmatpush1.msra.mxu0 0.0
    %1364 = vmatprep.subr.mxu0 0.0
    %1365 = vmatpush1.msra.mxu0 0.0
    %1366 = vmatprep.subr.mxu0 0.0
    %1367 = vmatpush1.msra.mxu0 0.0
    %1368 = vmatprep.subr.mxu0 0.0
    %1369 = vmatpush1.msra.mxu0 0.0
    %1370 = vmatprep.subr.mxu0 0.0
    %1371 = vmatpush1.msra.mxu0 0.0
    %1372 = vmatprep.subr.mxu0 0.0
    %1373 = vmatpush1.msra.mxu0 0.0
    %1374 = vmatprep.subr.mxu0 0.0
    %1375 = vmatpush1.msra.mxu0 0.0
    %1376 = vmatprep.subr.mxu0 0.0
    %1377 = vmatpush1.msra.mxu0 0.0
    %1378 = vmatprep.subr.mxu0 0.0
    %1379 = vmatpush1.msra.mxu0 0.0
    %1380 = vmatprep.subr.mxu0 0.0
    %1381 = vmatpush1.msra.mxu0 0.0
    %1382 = vmatprep.mubr.f32.mxu0 0.0
    %1383 = vmatmul.mubr.f32.gmra.mrb[0].mxu0 %v1243
    %v1384 = vpop.f32.mrb[0].mxu0
    %v1385 = vadd.f32 0.0, %v1384
    %v1386 = vpop.f32.mrb[0].mxu0
    %1387 = vdwg.mxu0
    %v1389 = vrot.slane %v1385, 6
    %v1391 = vadd.f32 %v400, %v1389
    %v1392 = vxor.u32 %v1391, 2147483648
    %v1393 = vmul.f32 %v1392, 1.442695
    %v1394 = vpow.pop %v1393
    %v1395 = vadd.f32 %v1394, 1.0
    %v1396 = vrcp.pop %v1395
    %v1397 = vmul.f32 1.0, %v1396
    %v1398 = vtanh.pop %v1391
    %v1400 = vrot.slane %v1229, 6
    %v1402 = vmul.f32 %v1397, %v1400
    %1404 = vrot.lane.b32.xlu0 %v1398, 96
    %v1405 = vpop.permute.xlu0 %1404
    %v1407 = vmul.f32 %v1397, %v1405
    %1409 = vrot.lane.b32.xlu0 %v1407, 16
    %v1410 = vpop.permute.xlu0 %1409
    %v1412 = vadd.f32 %v1402, %v1410
    %v1413 = vtanh.pop %v1412
    %1415 = vrot.lane.b32.xlu0 %v1413, 32
    %v1416 = vpop.permute.xlu0 %1415
    %v1418 = vmul.f32 %v1397, %v1416
    %v1419 = vld [vmem:[#allocation2 + $0xa0] sm:$0xff]
    %v1420 = vld [vmem:[#allocation2 + $0xa8] sm:$0xff]
    %v1421 = vld [vmem:[#allocation2 + $0xb0] sm:$0xff]
    %v1422 = vld [vmem:[#allocation2 + $0xb8] sm:$0xff]
    %v1424 = vrot.slane %v1418, 2
    %1425 = vrot.lane.b32.xlu0 %v1424, 80
    %v1426 = vpop.permute.xlu0 %1425
    %v1427 = vsel %vm409, %v1426, 0
    %1429 = vmatprep.subr.mxu0 %v1420
    %1430 = vmatpush1.msra.mxu0 %v1419
    %1431 = vmatprep.subr.mxu0 %v1422
    %1432 = vmatpush1.msra.mxu0 %v1421
    %1433 = vmatprep.subr.mxu0 0.0
    %1434 = vmatpush1.msra.mxu0 0.0
    %1435 = vmatprep.subr.mxu0 0.0
    %1436 = vmatpush1.msra.mxu0 0.0
    %1437 = vmatprep.subr.mxu0 0.0
    %1438 = vmatpush1.msra.mxu0 0.0
    %1439 = vmatprep.subr.mxu0 0.0
    %1440 = vmatpush1.msra.mxu0 0.0
    %1441 = vmatprep.subr.mxu0 0.0
    %1442 = vmatpush1.msra.mxu0 0.0
    %1443 = vmatprep.subr.mxu0 0.0
    %1444 = vmatpush1.msra.mxu0 0.0
    %1445 = vmatprep.subr.mxu0 0.0
    %1446 = vmatpush1.msra.mxu0 0.0
    %1447 = vmatprep.subr.mxu0 0.0
    %1448 = vmatpush1.msra.mxu0 0.0
    %1449 = vmatprep.subr.mxu0 0.0
    %1450 = vmatpush1.msra.mxu0 0.0
    %1451 = vmatprep.subr.mxu0 0.0
    %1452 = vmatpush1.msra.mxu0 0.0
    %1453 = vmatprep.subr.mxu0 0.0
    %1454 = vmatpush1.msra.mxu0 0.0
    %1455 = vmatprep.subr.mxu0 0.0
    %1456 = vmatpush1.msra.mxu0 0.0
    %1457 = vmatprep.subr.mxu0 0.0
    %1458 = vmatpush1.msra.mxu0 0.0
    %1459 = vmatprep.subr.mxu0 0.0
    %1460 = vmatpush1.msra.mxu0 0.0
    %1461 = vmatprep.subr.mxu0 0.0
    %1462 = vmatpush1.msra.mxu0 0.0
    %1463 = vmatprep.subr.mxu0 0.0
    %1464 = vmatpush1.msra.mxu0 0.0
    %1465 = vmatprep.subr.mxu0 0.0
    %1466 = vmatpush1.msra.mxu0 0.0
    %1467 = vmatprep.subr.mxu0 0.0
    %1468 = vmatpush1.msra.mxu0 0.0
    %1469 = vmatprep.subr.mxu0 0.0
    %1470 = vmatpush1.msra.mxu0 0.0
    %1471 = vmatprep.subr.mxu0 0.0
    %1472 = vmatpush1.msra.mxu0 0.0
    %1473 = vmatprep.subr.mxu0 0.0
    %1474 = vmatpush1.msra.mxu0 0.0
    %1475 = vmatprep.subr.mxu0 0.0
    %1476 = vmatpush1.msra.mxu0 0.0
    %1477 = vmatprep.subr.mxu0 0.0
    %1478 = vmatpush1.msra.mxu0 0.0
    %1479 = vmatprep.subr.mxu0 0.0
    %1480 = vmatpush1.msra.mxu0 0.0
    %1481 = vmatprep.subr.mxu0 0.0
    %1482 = vmatpush1.msra.mxu0 0.0
    %1483 = vmatprep.subr.mxu0 0.0
    %1484 = vmatpush1.msra.mxu0 0.0
    %1485 = vmatprep.subr.mxu0 0.0
    %1486 = vmatpush1.msra.mxu0 0.0
    %1487 = vmatprep.subr.mxu0 0.0
    %1488 = vmatpush1.msra.mxu0 0.0
    %1489 = vmatprep.subr.mxu0 0.0
    %1490 = vmatpush1.msra.mxu0 0.0
    %1491 = vmatprep.subr.mxu0 0.0
    %1492 = vmatpush1.msra.mxu0 0.0
    %1493 = vmatprep.mubr.f32.mxu0 0.0
    %1494 = vmatmul.mubr.f32.gmra.mrb[0].mxu0 %v1427
    %v1495 = vpop.f32.mrb[0].mxu0
    %v1496 = vadd.f32 0.0, %v1495
    %v1497 = vpop.f32.mrb[0].mxu0
    %v1498 = vadd.f32 0.0, %v1497
    %1499 = vdwg.mxu0
    %v1500 = vadd.f32 %v1316, %v1496
    %v1501 = vadd.f32 %v1317, %v1498
    %1502 = vmatprep.subr.mxu0 0.0
    %1503 = vmatpush1.msra.mxu0 %v403
    %1504 = vmatprep.subr.mxu0 0.0
    %1505 = vmatpush1.msra.mxu0 %v404
    %1506 = vmatprep.subr.mxu0 0.0
    %1507 = vmatpush1.msra.mxu0 0.0
    %1508 = vmatprep.subr.mxu0 0.0
    %1509 = vmatpush1.msra.mxu0 0.0
    %1510 = vmatprep.subr.mxu0 0.0
    %1511 = vmatpush1.msra.mxu0 0.0
    %1512 = vmatprep.subr.mxu0 0.0
    %1513 = vmatpush1.msra.mxu0 0.0
    %1514 = vmatprep.subr.mxu0 0.0
    %1515 = vmatpush1.msra.mxu0 0.0
    %1516 = vmatprep.subr.mxu0 0.0
    %1517 = vmatpush1.msra.mxu0 0.0
    %1518 = vmatprep.subr.mxu0 0.0
    %1519 = vmatpush1.msra.mxu0 0.0
    %1520 = vmatprep.subr.mxu0 0.0
    %1521 = vmatpush1.msra.mxu0 0.0
    %1522 = vmatprep.subr.mxu0 0.0
    %1523 = vmatpush1.msra.mxu0 0.0
    %1524 = vmatprep.subr.mxu0 0.0
    %1525 = vmatpush1.msra.mxu0 0.0
    %1526 = vmatprep.subr.mxu0 0.0
    %1527 = vmatpush1.msra.mxu0 0.0
    %1528 = vmatprep.subr.mxu0 0.0
    %1529 = vmatpush1.msra.mxu0 0.0
    %1530 = vmatprep.subr.mxu0 0.0
    %1531 = vmatpush1.msra.mxu0 0.0
    %1532 = vmatprep.subr.mxu0 0.0
    %1533 = vmatpush1.msra.mxu0 0.0
    %1534 = vmatprep.subr.mxu0 0.0
    %1535 = vmatpush1.msra.mxu0 0.0
    %1536 = vmatprep.subr.mxu0 0.0
    %1537 = vmatpush1.msra.mxu0 0.0
    %1538 = vmatprep.subr.mxu0 0.0
    %1539 = vmatpush1.msra.mxu0 0.0
    %1540 = vmatprep.subr.mxu0 0.0
    %1541 = vmatpush1.msra.mxu0 0.0
    %1542 = vmatprep.subr.mxu0 0.0
    %1543 = vmatpush1.msra.mxu0 0.0
    %1544 = vmatprep.subr.mxu0 0.0
    %1545 = vmatpush1.msra.mxu0 0.0
    %1546 = vmatprep.subr.mxu0 0.0
    %1547 = vmatpush1.msra.mxu0 0.0
    %1548 = vmatprep.subr.mxu0 0.0
    %1549 = vmatpush1.msra.mxu0 0.0
    %1550 = vmatprep.subr.mxu0 0.0
    %1551 = vmatpush1.msra.mxu0 0.0
    %1552 = vmatprep.subr.mxu0 0.0
    %1553 = vmatpush1.msra.mxu0 0.0
    %1554 = vmatprep.subr.mxu0 0.0
    %1555 = vmatpush1.msra.mxu0 0.0
    %1556 = vmatprep.subr.mxu0 0.0
    %1557 = vmatpush1.msra.mxu0 0.0
    %1558 = vmatprep.subr.mxu0 0.0
    %1559 = vmatpush1.msra.mxu0 0.0
    %1560 = vmatprep.subr.mxu0 0.0
    %1561 = vmatpush1.msra.mxu0 0.0
    %1562 = vmatprep.subr.mxu0 0.0
    %1563 = vmatpush1.msra.mxu0 0.0
    %1564 = vmatprep.subr.mxu0 0.0
    %1565 = vmatpush1.msra.mxu0 0.0
    %1566 = vmatprep.mubr.f32.mxu0 0.0
    %1567 = vmatmul.mubr.f32.gmra.mrb[0].mxu0 %v1427
    %v1568 = vpop.f32.mrb[0].mxu0
    %v1569 = vadd.f32 0.0, %v1568
    %v1570 = vpop.f32.mrb[0].mxu0
    %1571 = vdwg.mxu0
    %v1573 = vrot.slane %v1569, 4
    %v1575 = vadd.f32 %v400, %v1573
    %v1576 = vxor.u32 %v1575, 2147483648
    %v1577 = vmul.f32 %v1576, 1.442695
    %v1578 = vpow.pop %v1577
    %v1579 = vadd.f32 %v1578, 1.0
    %v1580 = vrcp.pop %v1579
    %v1581 = vmul.f32 1.0, %v1580
    %v1582 = vtanh.pop %v1575
    %v1584 = vrot.slane %v1412, 6
    %v1586 = vmul.f32 %v1581, %v1584
    %1588 = vrot.lane.b32.xlu0 %v1582, 96
    %v1589 = vpop.permute.xlu0 %1588
    %v1591 = vmul.f32 %v1581, %v1589
    %1593 = vrot.lane.b32.xlu0 %v1591, 16
    %v1594 = vpop.permute.xlu0 %1593
    %v1596 = vadd.f32 %v1586, %v1594
    %v1597 = vtanh.pop %v1596
    %1599 = vrot.lane.b32.xlu0 %v1597, 32
    %v1600 = vpop.permute.xlu0 %1599
    %v1602 = vmul.f32 %v1581, %v1600
    %v1603 = vld [vmem:[#allocation2 + $0xc0] sm:$0xff]
    %v1604 = vld [vmem:[#allocation2 + $0xc8] sm:$0xff]
    %v1605 = vld [vmem:[#allocation2 + $0xd0] sm:$0xff]
    %v1606 = vld [vmem:[#allocation2 + $0xd8] sm:$0xff]
    %v1608 = vrot.slane %v1602, 4
    %1609 = vrot.lane.b32.xlu0 %v1608, 80
    %v1610 = vpop.permute.xlu0 %1609
    %v1611 = vsel %vm409, %v1610, 0
    %1613 = vmatprep.subr.mxu0 %v1604
    %1614 = vmatpush1.msra.mxu0 %v1603
    %1615 = vmatprep.subr.mxu0 %v1606
    %1616 = vmatpush1.msra.mxu0 %v1605
    %1617 = vmatprep.subr.mxu0 0.0
    %1618 = vmatpush1.msra.mxu0 0.0
    %1619 = vmatprep.subr.mxu0 0.0
    %1620 = vmatpush1.msra.mxu0 0.0
    %1621 = vmatprep.subr.mxu0 0.0
    %1622 = vmatpush1.msra.mxu0 0.0
    %1623 = vmatprep.subr.mxu0 0.0
    %1624 = vmatpush1.msra.mxu0 0.0
    %1625 = vmatprep.subr.mxu0 0.0
    %1626 = vmatpush1.msra.mxu0 0.0
    %1627 = vmatprep.subr.mxu0 0.0
    %1628 = vmatpush1.msra.mxu0 0.0
    %1629 = vmatprep.subr.mxu0 0.0
    %1630 = vmatpush1.msra.mxu0 0.0
    %1631 = vmatprep.subr.mxu0 0.0
    %1632 = vmatpush1.msra.mxu0 0.0
    %1633 = vmatprep.subr.mxu0 0.0
    %1634 = vmatpush1.msra.mxu0 0.0
    %1635 = vmatprep.subr.mxu0 0.0
    %1636 = vmatpush1.msra.mxu0 0.0
    %1637 = vmatprep.subr.mxu0 0.0
    %1638 = vmatpush1.msra.mxu0 0.0
    %1639 = vmatprep.subr.mxu0 0.0
    %1640 = vmatpush1.msra.mxu0 0.0
    %1641 = vmatprep.subr.mxu0 0.0
    %1642 = vmatpush1.msra.mxu0 0.0
    %1643 = vmatprep.subr.mxu0 0.0
    %1644 = vmatpush1.msra.mxu0 0.0
    %1645 = vmatprep.subr.mxu0 0.0
    %1646 = vmatpush1.msra.mxu0 0.0
    %1647 = vmatprep.subr.mxu0 0.0
    %1648 = vmatpush1.msra.mxu0 0.0
    %1649 = vmatprep.subr.mxu0 0.0
    %1650 = vmatpush1.msra.mxu0 0.0
    %1651 = vmatprep.subr.mxu0 0.0
    %1652 = vmatpush1.msra.mxu0 0.0
    %1653 = vmatprep.subr.mxu0 0.0
    %1654 = vmatpush1.msra.mxu0 0.0
    %1655 = vmatprep.subr.mxu0 0.0
    %1656 = vmatpush1.msra.mxu0 0.0
    %1657 = vmatprep.subr.mxu0 0.0
    %1658 = vmatpush1.msra.mxu0 0.0
    %1659 = vmatprep.subr.mxu0 0.0
    %1660 = vmatpush1.msra.mxu0 0.0
    %1661 = vmatprep.subr.mxu0 0.0
    %1662 = vmatpush1.msra.mxu0 0.0
    %1663 = vmatprep.subr.mxu0 0.0
    %1664 = vmatpush1.msra.mxu0 0.0
    %1665 = vmatprep.subr.mxu0 0.0
    %1666 = vmatpush1.msra.mxu0 0.0
    %1667 = vmatprep.subr.mxu0 0.0
    %1668 = vmatpush1.msra.mxu0 0.0
    %1669 = vmatprep.subr.mxu0 0.0
    %1670 = vmatpush1.msra.mxu0 0.0
    %1671 = vmatprep.subr.mxu0 0.0
    %1672 = vmatpush1.msra.mxu0 0.0
    %1673 = vmatprep.subr.mxu0 0.0
    %1674 = vmatpush1.msra.mxu0 0.0
    %1675 = vmatprep.subr.mxu0 0.0
    %1676 = vmatpush1.msra.mxu0 0.0
    %1677 = vmatprep.mubr.f32.mxu0 0.0
    %1678 = vmatmul.mubr.f32.gmra.mrb[0].mxu0 %v1611
    %v1679 = vpop.f32.mrb[0].mxu0
    %v1680 = vadd.f32 0.0, %v1679
    %v1681 = vpop.f32.mrb[0].mxu0
    %v1682 = vadd.f32 0.0, %v1681
    %1683 = vdwg.mxu0
    %v1684 = vadd.f32 %v1500, %v1680
    %v1685 = vadd.f32 %v1501, %v1682
    %1686 = vmatprep.subr.mxu0 0.0
    %1687 = vmatpush1.msra.mxu0 %v403
    %1688 = vmatprep.subr.mxu0 0.0
    %1689 = vmatpush1.msra.mxu0 %v404
    %1690 = vmatprep.subr.mxu0 0.0
    %1691 = vmatpush1.msra.mxu0 0.0
    %1692 = vmatprep.subr.mxu0 0.0
    %1693 = vmatpush1.msra.mxu0 0.0
    %1694 = vmatprep.subr.mxu0 0.0
    %1695 = vmatpush1.msra.mxu0 0.0
    %1696 = vmatprep.subr.mxu0 0.0
    %1697 = vmatpush1.msra.mxu0 0.0
    %1698 = vmatprep.subr.mxu0 0.0
    %1699 = vmatpush1.msra.mxu0 0.0
    %1700 = vmatprep.subr.mxu0 0.0
    %1701 = vmatpush1.msra.mxu0 0.0
    %1702 = vmatprep.subr.mxu0 0.0
    %1703 = vmatpush1.msra.mxu0 0.0
    %1704 = vmatprep.subr.mxu0 0.0
    %1705 = vmatpush1.msra.mxu0 0.0
    %1706 = vmatprep.subr.mxu0 0.0
    %1707 = vmatpush1.msra.mxu0 0.0
    %1708 = vmatprep.subr.mxu0 0.0
    %1709 = vmatpush1.msra.mxu0 0.0
    %1710 = vmatprep.subr.mxu0 0.0
    %1711 = vmatpush1.msra.mxu0 0.0
    %1712 = vmatprep.subr.mxu0 0.0
    %1713 = vmatpush1.msra.mxu0 0.0
    %1714 = vmatprep.subr.mxu0 0.0
    %1715 = vmatpush1.msra.mxu0 0.0
    %1716 = vmatprep.subr.mxu0 0.0
    %1717 = vmatpush1.msra.mxu0 0.0
    %1718 = vmatprep.subr.mxu0 0.0
    %1719 = vmatpush1.msra.mxu0 0.0
    %1720 = vmatprep.subr.mxu0 0.0
    %1721 = vmatpush1.msra.mxu0 0.0
    %1722 = vmatprep.subr.mxu0 0.0
    %1723 = vmatpush1.msra.mxu0 0.0
    %1724 = vmatprep.subr.mxu0 0.0
    %1725 = vmatpush1.msra.mxu0 0.0
    %1726 = vmatprep.subr.mxu0 0.0
    %1727 = vmatpush1.msra.mxu0 0.0
    %1728 = vmatprep.subr.mxu0 0.0
    %1729 = vmatpush1.msra.mxu0 0.0
    %1730 = vmatprep.subr.mxu0 0.0
    %1731 = vmatpush1.msra.mxu0 0.0
    %1732 = vmatprep.subr.mxu0 0.0
    %1733 = vmatpush1.msra.mxu0 0.0
    %1734 = vmatprep.subr.mxu0 0.0
    %1735 = vmatpush1.msra.mxu0 0.0
    %1736 = vmatprep.subr.mxu0 0.0
    %1737 = vmatpush1.msra.mxu0 0.0
    %1738 = vmatprep.subr.mxu0 0.0
    %1739 = vmatpush1.msra.mxu0 0.0
    %1740 = vmatprep.subr.mxu0 0.0
    %1741 = vmatpush1.msra.mxu0 0.0
    %1742 = vmatprep.subr.mxu0 0.0
    %1743 = vmatpush1.msra.mxu0 0.0
    %1744 = vmatprep.subr.mxu0 0.0
    %1745 = vmatpush1.msra.mxu0 0.0
    %1746 = vmatprep.subr.mxu0 0.0
    %1747 = vmatpush1.msra.mxu0 0.0
    %1748 = vmatprep.subr.mxu0 0.0
    %1749 = vmatpush1.msra.mxu0 0.0
    %1750 = vmatprep.mubr.f32.mxu0 0.0
    %1751 = vmatmul.mubr.f32.gmra.mrb[0].mxu0 %v1611
    %v1752 = vpop.f32.mrb[0].mxu0
    %v1753 = vadd.f32 0.0, %v1752
    %v1754 = vpop.f32.mrb[0].mxu0
    %1755 = vdwg.mxu0
    %v1757 = vrot.slane %v1753, 2
    %v1759 = vadd.f32 %v400, %v1757
    %v1760 = vxor.u32 %v1759, 2147483648
    %v1761 = vmul.f32 %v1760, 1.442695
    %v1762 = vpow.pop %v1761
    %v1763 = vadd.f32 %v1762, 1.0
    %v1764 = vrcp.pop %v1763
    %v1765 = vmul.f32 1.0, %v1764
    %v1766 = vtanh.pop %v1759
    %v1768 = vrot.slane %v1596, 6
    %v1770 = vmul.f32 %v1765, %v1768
    %1772 = vrot.lane.b32.xlu0 %v1766, 96
    %v1773 = vpop.permute.xlu0 %1772
    %v1775 = vmul.f32 %v1765, %v1773
    %1777 = vrot.lane.b32.xlu0 %v1775, 16
    %v1778 = vpop.permute.xlu0 %1777
    %v1780 = vadd.f32 %v1770, %v1778
    %v1781 = vtanh.pop %v1780
    %1783 = vrot.lane.b32.xlu0 %v1781, 32
    %v1784 = vpop.permute.xlu0 %1783
    %v1786 = vmul.f32 %v1765, %v1784
    %v1787 = vld [vmem:[#allocation2 + $0xe0] sm:$0xff]
    %v1788 = vld [vmem:[#allocation2 + $0xe8] sm:$0xff]
    %v1789 = vld [vmem:[#allocation2 + $0xf0] sm:$0xff]
    %v1790 = vld [vmem:[#allocation2 + $0xf8] sm:$0xff]
    %v1792 = vrot.slane %v1786, 6
    %1793 = vrot.lane.b32.xlu0 %v1792, 80
    %v1794 = vpop.permute.xlu0 %1793
    %v1795 = vsel %vm409, %v1794, 0
    %1797 = vmatprep.subr.mxu0 %v1788
    %1798 = vmatpush1.msra.mxu0 %v1787
    %1799 = vmatprep.subr.mxu0 %v1790
    %1800 = vmatpush1.msra.mxu0 %v1789
    %1801 = vmatprep.subr.mxu0 0.0
    %1802 = vmatpush1.msra.mxu0 0.0
    %1803 = vmatprep.subr.mxu0 0.0
    %1804 = vmatpush1.msra.mxu0 0.0
    %1805 = vmatprep.subr.mxu0 0.0
    %1806 = vmatpush1.msra.mxu0 0.0
    %1807 = vmatprep.subr.mxu0 0.0
    %1808 = vmatpush1.msra.mxu0 0.0
    %1809 = vmatprep.subr.mxu0 0.0
    %1810 = vmatpush1.msra.mxu0 0.0
    %1811 = vmatprep.subr.mxu0 0.0
    %1812 = vmatpush1.msra.mxu0 0.0
    %1813 = vmatprep.subr.mxu0 0.0
    %1814 = vmatpush1.msra.mxu0 0.0
    %1815 = vmatprep.subr.mxu0 0.0
    %1816 = vmatpush1.msra.mxu0 0.0
    %1817 = vmatprep.subr.mxu0 0.0
    %1818 = vmatpush1.msra.mxu0 0.0
    %1819 = vmatprep.subr.mxu0 0.0
    %1820 = vmatpush1.msra.mxu0 0.0
    %1821 = vmatprep.subr.mxu0 0.0
    %1822 = vmatpush1.msra.mxu0 0.0
    %1823 = vmatprep.subr.mxu0 0.0
    %1824 = vmatpush1.msra.mxu0 0.0
    %1825 = vmatprep.subr.mxu0 0.0
    %1826 = vmatpush1.msra.mxu0 0.0
    %1827 = vmatprep.subr.mxu0 0.0
    %1828 = vmatpush1.msra.mxu0 0.0
    %1829 = vmatprep.subr.mxu0 0.0
    %1830 = vmatpush1.msra.mxu0 0.0
    %1831 = vmatprep.subr.mxu0 0.0
    %1832 = vmatpush1.msra.mxu0 0.0
    %1833 = vmatprep.subr.mxu0 0.0
    %1834 = vmatpush1.msra.mxu0 0.0
    %1835 = vmatprep.subr.mxu0 0.0
    %1836 = vmatpush1.msra.mxu0 0.0
    %1837 = vmatprep.subr.mxu0 0.0
    %1838 = vmatpush1.msra.mxu0 0.0
    %1839 = vmatprep.subr.mxu0 0.0
    %1840 = vmatpush1.msra.mxu0 0.0
    %1841 = vmatprep.subr.mxu0 0.0
    %1842 = vmatpush1.msra.mxu0 0.0
    %1843 = vmatprep.subr.mxu0 0.0
    %1844 = vmatpush1.msra.mxu0 0.0
    %1845 = vmatprep.subr.mxu0 0.0
    %1846 = vmatpush1.msra.mxu0 0.0
    %1847 = vmatprep.subr.mxu0 0.0
    %1848 = vmatpush1.msra.mxu0 0.0
    %1849 = vmatprep.subr.mxu0 0.0
    %1850 = vmatpush1.msra.mxu0 0.0
    %1851 = vmatprep.subr.mxu0 0.0
    %1852 = vmatpush1.msra.mxu0 0.0
    %1853 = vmatprep.subr.mxu0 0.0
    %1854 = vmatpush1.msra.mxu0 0.0
    %1855 = vmatprep.subr.mxu0 0.0
    %1856 = vmatpush1.msra.mxu0 0.0
    %1857 = vmatprep.subr.mxu0 0.0
    %1858 = vmatpush1.msra.mxu0 0.0
    %1859 = vmatprep.subr.mxu0 0.0
    %1860 = vmatpush1.msra.mxu0 0.0
    %1861 = vmatprep.mubr.f32.mxu0 0.0
    %1862 = vmatmul.mubr.f32.gmra.mrb[0].mxu0 %v1795
    %v1863 = vpop.f32.mrb[0].mxu0
    %v1864 = vadd.f32 0.0, %v1863
    %v1865 = vpop.f32.mrb[0].mxu0
    %v1866 = vadd.f32 0.0, %v1865
    %1867 = vdwg.mxu0
    %v1868 = vadd.f32 %v1684, %v1864
    %v1869 = vadd.f32 %v1685, %v1866
    %v1870 = vld [vmem:[%s10] sm:$0x3]
    %v1872 = vlaneseq
    %v1873 = vshrl.u32 %v1872, 7
    %v1874 = vsub.s32 0, %v1873
    %v1875 = vrot.slane %v1870, %v1874
    %v1876 = vlaneseq
    %v1877 = vshrl.u32 %v1876, 7
    %v1878 = vsub.s32 1, %v1877
    %v1879 = vrot.slane %v1870, %v1878
    %v1882 = vadd.f32 %v1868, %v1875
    %v1883 = vadd.f32 %v1869, %v1879
    %v1884 = vmax.f32 %v1882, 0.0
    %v1885 = vmax.f32 %v1883, 0.0
    %s1886 = smul.u32 256, 1
    %s1887 = sshll.u32 %s1886, 4
    %1888 = dma.done %s55, %s1887
    %v1889 = vld [vmem:[#allocation3] sm:$0xff]
    %v1890 = vld [vmem:[#allocation3 + $0x8] sm:$0xff]
    %v1891 = vld [vmem:[#allocation3 + $0x10] sm:$0xff]
    %v1892 = vld [vmem:[#allocation3 + $0x18] sm:$0xff]
    %v1893 = vld [vmem:[#allocation3 + $0x20] sm:$0xff]
    %v1894 = vld [vmem:[#allocation3 + $0x28] sm:$0xff]
    %v1895 = vld [vmem:[#allocation3 + $0x30] sm:$0xff]
    %v1896 = vld [vmem:[#allocation3 + $0x38] sm:$0xff]
    %v1897 = vld [vmem:[#allocation3 + $0x40] sm:$0xff]
    %v1898 = vld [vmem:[#allocation3 + $0x48] sm:$0xff]
    %v1899 = vld [vmem:[#allocation3 + $0x50] sm:$0xff]
    %v1900 = vld [vmem:[#allocation3 + $0x58] sm:$0xff]
    %v1901 = vld [vmem:[#allocation3 + $0x60] sm:$0xff]
    %v1902 = vld [vmem:[#allocation3 + $0x68] sm:$0xff]
    %v1903 = vld [vmem:[#allocation3 + $0x70] sm:$0xff]
    %v1904 = vld [vmem:[#allocation3 + $0x78] sm:$0xff]
    %v1905 = vld [vmem:[#allocation3 + $0x80] sm:$0xff]
    %v1906 = vld [vmem:[#allocation3 + $0x88] sm:$0xff]
    %v1907 = vld [vmem:[#allocation3 + $0x90] sm:$0xff]
    %v1908 = vld [vmem:[#allocation3 + $0x98] sm:$0xff]
    %v1909 = vld [vmem:[#allocation3 + $0xa0] sm:$0xff]
    %v1910 = vld [vmem:[#allocation3 + $0xa8] sm:$0xff]
    %v1911 = vld [vmem:[#allocation3 + $0xb0] sm:$0xff]
    %v1912 = vld [vmem:[#allocation3 + $0xb8] sm:$0xff]
    %v1913 = vld [vmem:[#allocation3 + $0xc0] sm:$0xff]
    %v1914 = vld [vmem:[#allocation3 + $0xc8] sm:$0xff]
    %v1915 = vld [vmem:[#allocation3 + $0xd0] sm:$0xff]
    %v1916 = vld [vmem:[#allocation3 + $0xd8] sm:$0xff]
    %v1917 = vld [vmem:[#allocation3 + $0xe0] sm:$0xff]
    %v1918 = vld [vmem:[#allocation3 + $0xe8] sm:$0xff]
    %v1919 = vld [vmem:[#allocation3 + $0xf0] sm:$0xff]
    %v1920 = vld [vmem:[#allocation3 + $0xf8] sm:$0xff]
    %v1921 = vld [vmem:[%s11] sm:$0x1]
    %v1923 = vlaneseq
    %v1924 = vshrl.u32 %v1923, 7
    %v1925 = vsub.s32 0, %v1924
    %v1926 = vrot.slane %v1921, %v1925
    %1928 = vmatprep.subr.mxu0 0.0
    %1929 = vmatpush1.msra.mxu0 %v1889
    %1930 = vmatprep.subr.mxu0 0.0
    %1931 = vmatpush1.msra.mxu0 %v1890
    %1932 = vmatprep.subr.mxu0 0.0
    %1933 = vmatpush1.msra.mxu0 %v1891
    %1934 = vmatprep.subr.mxu0 0.0
    %1935 = vmatpush1.msra.mxu0 %v1892
    %1936 = vmatprep.subr.mxu0 0.0
    %1937 = vmatpush1.msra.mxu0 %v1893
    %1938 = vmatprep.subr.mxu0 0.0
    %1939 = vmatpush1.msra.mxu0 %v1894
    %1940 = vmatprep.subr.mxu0 0.0
    %1941 = vmatpush1.msra.mxu0 %v1895
    %1942 = vmatprep.subr.mxu0 0.0
    %1943 = vmatpush1.msra.mxu0 %v1896
    %1944 = vmatprep.subr.mxu0 0.0
    %1945 = vmatpush1.msra.mxu0 %v1897
    %1946 = vmatprep.subr.mxu0 0.0
    %1947 = vmatpush1.msra.mxu0 %v1898
    %1948 = vmatprep.subr.mxu0 0.0
    %1949 = vmatpush1.msra.mxu0 %v1899
    %1950 = vmatprep.subr.mxu0 0.0
    %1951 = vmatpush1.msra.mxu0 %v1900
    %1952 = vmatprep.subr.mxu0 0.0
    %1953 = vmatpush1.msra.mxu0 %v1901
    %1954 = vmatprep.subr.mxu0 0.0
    %1955 = vmatpush1.msra.mxu0 %v1902
    %1956 = vmatprep.subr.mxu0 0.0
    %1957 = vmatpush1.msra.mxu0 %v1903
    %1958 = vmatprep.subr.mxu0 0.0
    %1959 = vmatpush1.msra.mxu0 %v1904
    %1960 = vmatprep.subr.mxu0 0.0
    %1961 = vmatpush1.msra.mxu0 %v1905
    %1962 = vmatprep.subr.mxu0 0.0
    %1963 = vmatpush1.msra.mxu0 %v1906
    %1964 = vmatprep.subr.mxu0 0.0
    %1965 = vmatpush1.msra.mxu0 %v1907
    %1966 = vmatprep.subr.mxu0 0.0
    %1967 = vmatpush1.msra.mxu0 %v1908
    %1968 = vmatprep.subr.mxu0 0.0
    %1969 = vmatpush1.msra.mxu0 %v1909
    %1970 = vmatprep.subr.mxu0 0.0
    %1971 = vmatpush1.msra.mxu0 %v1910
    %1972 = vmatprep.subr.mxu0 0.0
    %1973 = vmatpush1.msra.mxu0 %v1911
    %1974 = vmatprep.subr.mxu0 0.0
    %1975 = vmatpush1.msra.mxu0 %v1912
    %1976 = vmatprep.subr.mxu0 0.0
    %1977 = vmatpush1.msra.mxu0 %v1913
    %1978 = vmatprep.subr.mxu0 0.0
    %1979 = vmatpush1.msra.mxu0 %v1914
    %1980 = vmatprep.subr.mxu0 0.0
    %1981 = vmatpush1.msra.mxu0 %v1915
    %1982 = vmatprep.subr.mxu0 0.0
    %1983 = vmatpush1.msra.mxu0 %v1916
    %1984 = vmatprep.subr.mxu0 0.0
    %1985 = vmatpush1.msra.mxu0 %v1917
    %1986 = vmatprep.subr.mxu0 0.0
    %1987 = vmatpush1.msra.mxu0 %v1918
    %1988 = vmatprep.subr.mxu0 0.0
    %1989 = vmatpush1.msra.mxu0 %v1919
    %1990 = vmatprep.subr.mxu0 0.0
    %1991 = vmatpush1.msra.mxu0 %v1920
    %1992 = vmatprep.mubr.f32.mxu0 %v1885
    %1993 = vmatmul.mubr.f32.gmra.mrb[0].mxu0 %v1884
    %v1994 = vpop.f32.mrb[0].mxu0
    %v1995 = vadd.f32 %v1926, %v1994
    %v1996 = vpop.f32.mrb[0].mxu0
    %1997 = vdwg.mxu0
    %1998 = vst [vmem:[#allocation5] sm:$0x3] %v1995
    // Predicated region
    $region58: #{run_embrace.1} parent=1 // pred_check
      _
    $region59: #{run_embrace.1} parent=1 // pred_check_branch
      %2000 = sbr.rel (0) target = $region61
    $region60: #{run_embrace.1} parent=1 // pred_region
      %s2002 = ssub.s32 32, 32
      %2003 = vsyncadd [#allocation6], %s2002
      %s2005 = sshll.u32 [#allocation5], 4
      %s2006 = int_to_ptr.vmem [resolvable:$true] %s2005
      %2008 = dma.vmem_to_hbm [thread:$0]  %s2006, 32, %s14, [#allocation6]
    $region61: #{run_embrace.1} parent=1 // pred_fallthru
      _
    // Predicated region
    $region62: #{run_embrace.1} parent=1 // pred_check
      _
    $region63: #{run_embrace.1} parent=1 // pred_check_branch
      %2010 = sbr.rel (0) target = $region65
    $region64: #{run_embrace.1} parent=1 // pred_region
      %2011 = dma.done [#allocation6], 32
    $region65: #{run_embrace.1} parent=1 // pred_fallthru
      _
    %2012 = vsyncpa [#allocation6], 1
  %2013 = vsyncmov [#allocation4]
  %s2014 = vpop.sfrf %2013
  %p2015 = scmp.eq.s32.totalorder %s2014, 0
  %p2016 = pneg %p2015
  %2018 = shalt.err (%p2016)
  %s2019 = scalar_lea.sflag [#allocation4], 1
  %2020 = vsyncmov %s2019
  %s2021 = vpop.sfrf %2020
  %p2022 = scmp.eq.s32.totalorder %s2021, 0
  %p2023 = pneg %p2022
  %2025 = shalt.err (%p2023)

</llo_original>
